<compile_context>
chip_gen: v7x
topology: tpu7x:2x2x1
jax: 0.10.0
libtpu: 0.0.40
codegen_flags: <defaults>
</compile_context>

<pallas_src>
import functools
import math

import jax
import jax.numpy as jnp
from jax.experimental import pallas as pl
from jax.experimental.pallas import tpu as pltpu


# ---------------------------------------------------------------------------
# Pallas kernels
# ---------------------------------------------------------------------------
def _ln_kernel(x_ref, g_ref, b_ref, o_ref, *, eps):
    """o = LayerNorm(x) * gamma + beta (reduce over lane axis). No residual."""
    x = x_ref[...]
    mu = jnp.mean(x, axis=-1, keepdims=True)
    xc = x - mu
    var = jnp.mean(xc * xc, axis=-1, keepdims=True)
    o_ref[...] = (xc * jax.lax.rsqrt(var + eps) * g_ref[...]
                  + b_ref[...]).astype(o_ref.dtype)


def layernorm(x, gamma, beta, eps=1e-12):
    return pl.pallas_call(
        functools.partial(_ln_kernel, eps=eps),
        out_shape=jax.ShapeDtypeStruct(x.shape, x.dtype),
    )(x, gamma, beta)


def _attn_block_kernel(x_ref, wqkv_ref, bqkv_ref, bias_ref, wo_ref, bo_ref,
                       g_ref, bb_ref, o_ref, qkv_ref, *, nh, dh, eps):
    """Per-batch fused attention block:
       QKV proj -> per-head softmax attention -> out proj -> +residual -> LN."""
    S, H = x_ref.shape
    x = x_ref[...]

    # One fused (S, 3H) projection; staged in VMEM scratch so head slices are
    # plain ref loads (heads are contiguous Dh-wide lane slices).
    qkv_ref[...] = (jnp.dot(x, wqkv_ref[...], preferred_element_type=jnp.float32)
                    + bqkv_ref[...])

    bias = bias_ref[0]                       # (1, S) additive mask bias
    scale = 1.0 / math.sqrt(dh)

    # acc accumulates (ctx @ Wo) per head + output bias + residual.
    acc = bo_ref[...] + x
    for h in range(nh):                      # static unroll, nh is tiny
        lo = h * dh
        q = qkv_ref[:, lo:lo + dh]           # (S, Dh)
        k = qkv_ref[:, H + lo:H + lo + dh]   # (S, Dh)
        v = qkv_ref[:, 2 * H + lo:2 * H + lo + dh]

        # Contract last dims directly (no k.T / XLU transpose).
        s = jax.lax.dot_general(q, k, (((1,), (1,)), ((), ())),
                                preferred_element_type=jnp.float32)
        s = s * scale + bias
        m = jnp.max(s, axis=-1, keepdims=True)
        p = jnp.exp(s - m)
        l = jnp.sum(p, axis=-1, keepdims=True)
        ctx = jnp.dot(p, v, preferred_element_type=jnp.float32)
        # Fold 1/l in after p@v: one EUP reciprocal + (S, Dh) mul instead of an
        # (S, S) VALU divide.
        ctx = ctx * pl.reciprocal(l, approx=True)

        # ctx @ Wo restricted to this head's rows of Wo (== concat-then-matmul).
        acc = acc + jnp.dot(ctx, wo_ref[lo:lo + dh, :],
                            preferred_element_type=jnp.float32)

    # LayerNorm(attn_out + residual)
    mu = jnp.mean(acc, axis=-1, keepdims=True)
    yc = acc - mu
    var = jnp.mean(yc * yc, axis=-1, keepdims=True)
    o_ref[...] = (yc * jax.lax.rsqrt(var + eps) * g_ref[...]
                  + bb_ref[...]).astype(o_ref.dtype)


def attention_block(x, wqkv, bqkv, bias, wo, bo, gamma, beta,
                    *, batch, seq, nh, dh, eps=1e-12):
    H = x.shape[1]
    full = lambda shape: pl.BlockSpec(shape, lambda i: tuple(0 for _ in shape))
    return pl.pallas_call(
        functools.partial(_attn_block_kernel, nh=nh, dh=dh, eps=eps),
        grid=(batch,),
        in_specs=[
            pl.BlockSpec((seq, H), lambda i: (i, 0)),        # x rows of batch i
            full((H, 3 * H)),                                 # fused QKV weight
            full((1, 3 * H)),                                 # fused QKV bias
            pl.BlockSpec((1, 1, seq), lambda i: (i, 0, 0)),   # mask bias
            full((H, H)),                                     # Wo
            full((1, H)),                                     # bo
            full((1, H)),                                     # ln gamma
            full((1, H)),                                     # ln beta
        ],
        out_specs=pl.BlockSpec((seq, H), lambda i: (i, 0)),
        out_shape=jax.ShapeDtypeStruct((batch * seq, H), x.dtype),
        scratch_shapes=[pltpu.VMEM((seq, 3 * H), jnp.float32)],
        compiler_params=pltpu.CompilerParams(
            dimension_semantics=("parallel",)),
    )(x, wqkv, bqkv, bias, wo, bo, gamma, beta)


def _ffn_kernel(x_ref, w1_ref, b1_ref, w2_ref, b2_ref, g_ref, bb_ref, *rest,
                eps, with_head):
    """Fused FFN: gelu(x@W1+b1)@W2+b2 -> +residual -> LN.
       When with_head, the classifier head is applied in the same kernel."""
    if with_head:
        wout_ref, bout_ref, o_ref = rest
    else:
        (o_ref,) = rest

    x = x_ref[...]
    h = jnp.dot(x, w1_ref[...], preferred_element_type=jnp.float32) + b1_ref[...]
    # TODO(synk): HF rubert uses exact (erf) GELU; tanh approximation used here.
    h = jax.nn.gelu(h, approximate=True)
    y = jnp.dot(h, w2_ref[...], preferred_element_type=jnp.float32) + b2_ref[...] + x

    mu = jnp.mean(y, axis=-1, keepdims=True)
    yc = y - mu
    var = jnp.mean(yc * yc, axis=-1, keepdims=True)
    y = yc * jax.lax.rsqrt(var + eps) * g_ref[...] + bb_ref[...]

    if with_head:
        # Classifier head fused into the last layer's kernel; logits are
        # produced for every token (negligible extra flops), CLS rows are
        # selected by the caller.
        o_ref[...] = (jnp.dot(y, wout_ref[...], preferred_element_type=jnp.float32)
                      + bout_ref[...]).astype(o_ref.dtype)
    else:
        o_ref[...] = y.astype(o_ref.dtype)


def ffn_block(x, w1, b1, w2, b2, gamma, beta, *, eps=1e-12, head=None):
    # TODO(synk): at realistic rubert shapes (H=768, I=3072, thousands of
    # tokens) this needs a (M, N, K) GridSpec with bf16 MXU inputs, f32
    # accumulators and VMEM-budgeted tiles (64 MiB on v7x); single-block is
    # fine at these toy sizes.
    if head is None:
        kern = functools.partial(_ffn_kernel, eps=eps, with_head=False)
        out_shape = jax.ShapeDtypeStruct(x.shape, x.dtype)
        args = (x, w1, b1, w2, b2, gamma, beta)
    else:
        w_out, b_out = head
        kern = functools.partial(_ffn_kernel, eps=eps, with_head=True)
        out_shape = jax.ShapeDtypeStruct((x.shape[0], w_out.shape[1]), x.dtype)
        args = (x, w1, b1, w2, b2, gamma, beta, w_out, b_out)
    return pl.pallas_call(kern, out_shape=out_shape)(*args)


# ---------------------------------------------------------------------------
# Parameters (deterministic synthetic init — no checkpoint load)
# ---------------------------------------------------------------------------
def init_params(key, cfg):
    H, I = cfg["hidden"], cfg["intermediate"]

    def nrm(k, shape):
        return 0.02 * jax.random.normal(k, shape, jnp.float32)

    keys = iter(jax.random.split(key, 4 + cfg["layers"] * 4))
    params = {
        "word_emb": nrm(next(keys), (cfg["vocab"], H)),
        "pos_emb": nrm(next(keys), (cfg["max_pos"], H)),
        "type_emb": nrm(next(keys), (2, H)),
        "emb_ln_g": jnp.ones((1, H), jnp.float32),
        "emb_ln_b": jnp.zeros((1, H), jnp.float32),
        "w_out": nrm(next(keys), (H, cfg["n_classes"])),
        "b_out": jnp.zeros((1, cfg["n_classes"]), jnp.float32),
        "layers": [],
    }
    for _ in range(cfg["layers"]):
        layer = {
            # Q|K|V fused into a single (H, 3H) weight / (1, 3H) bias.
            "wqkv": nrm(next(keys), (H, 3 * H)),
            "bqkv": jnp.zeros((1, 3 * H), jnp.float32),
            "wo": nrm(next(keys), (H, H)), "bo": jnp.zeros((1, H), jnp.float32),
            "ln1_g": jnp.ones((1, H), jnp.float32), "ln1_b": jnp.zeros((1, H), jnp.float32),
            "w_ff1": nrm(next(keys), (H, I)), "b_ff1": jnp.zeros((1, I), jnp.float32),
            "w_ff2": nrm(next(keys), (I, H)), "b_ff2": jnp.zeros((1, H), jnp.float32),
            "ln2_g": jnp.ones((1, H), jnp.float32), "ln2_b": jnp.zeros((1, H), jnp.float32),
        }
        params["layers"].append(layer)
    return params


# ---------------------------------------------------------------------------
# Forward pass == RussianStanceTwitterClassifier.forward (inference mode)
# ---------------------------------------------------------------------------
def forward(params, input_ids, attention_mask, cfg):
    B, S = input_ids.shape
    H = cfg["hidden"]
    NH = cfg["heads"]
    Dh = H // NH

    # Embeddings (word + position + token_type=0) — gather is plain-JAX glue.
    emb = (params["word_emb"][input_ids]
           + params["pos_emb"][jnp.arange(S)][None, :, :]
           + params["type_emb"][0][None, None, :])
    x = emb.reshape(B * S, H).astype(jnp.float32)
    x = layernorm(x, params["emb_ln_g"], params["emb_ln_b"])

    # Additive attention-mask bias, HF-style: 0 for keep, large negative for pad.
    bias = ((1.0 - attention_mask.astype(jnp.float32)) * -1e9).reshape(B, 1, S)

    n_layers = len(params["layers"])
    for li, layer in enumerate(params["layers"]):
        x = attention_block(x, layer["wqkv"], layer["bqkv"], bias,
                            layer["wo"], layer["bo"],
                            layer["ln1_g"], layer["ln1_b"],
                            batch=B, seq=S, nh=NH, dh=Dh)
        head = (params["w_out"], params["b_out"]) if li == n_layers - 1 else None
        x = ffn_block(x, layer["w_ff1"], layer["b_ff1"],
                      layer["w_ff2"], layer["b_ff2"],
                      layer["ln2_g"], layer["ln2_b"], head=head)

    # Last layer produced per-token logits (head fused); keep only CLS tokens.
    # TODO(synk): nn.Dropout(p=0.3) is only active in training; inference is identity.
    logits = x.reshape(B, S, cfg["n_classes"])[:, 0, :]
    return logits


if __name__ == "__main__":
    cfg = dict(vocab=100, hidden=32, heads=4, layers=2, intermediate=64,
               max_pos=16, n_classes=3)

    key = jax.random.PRNGKey(0)
    pkey, dkey = jax.random.split(key)
    params = init_params(pkey, cfg)

    B, S = 2, 8
    input_ids = jax.random.randint(dkey, (B, S), 0, cfg["vocab"], dtype=jnp.int32)
    attention_mask = jnp.ones((B, S), dtype=jnp.int32)

    logits = jax.jit(functools.partial(forward, cfg=cfg))(params, input_ids, attention_mask)
    jax.block_until_ready(logits)
    assert logits.shape == (B, cfg["n_classes"]), logits.shape
    print("KERNEL_OK")
</pallas_src>

<mosaic_0001>
module attributes {stable_mosaic.version = 11 : i64} {
  func.func @_ln_kernel(%arg0: memref<16x32xf32, #tpu.memory_space<vmem>>, %arg1: memref<1x32xf32, #tpu.memory_space<vmem>>, %arg2: memref<1x32xf32, #tpu.memory_space<vmem>>, %arg3: memref<16x32xf32, #tpu.memory_space<vmem>>) attributes {dimension_semantics = [], scalar_prefetch = 0 : i64, scratch_operands = 0 : i64, tpu.core_type = #tpu.core_type<tc>} {
    %c0 = arith.constant 0 : index
    %c0_0 = arith.constant 0 : index
    %0 = vector.load %arg0[%c0, %c0_0] : memref<16x32xf32, #tpu.memory_space<vmem>>, vector<16x32xf32>
    %cst = arith.constant dense<0.000000e+00> : vector<16xf32>
    %1 = vector.multi_reduction <add>, %0, %cst [1] : vector<16x32xf32> to vector<16xf32>
    %2 = vector.shape_cast %1 : vector<16xf32> to vector<16x1xf32>
    %cst_1 = arith.constant 3.200000e+01 : f32
    %3 = vector.broadcast %cst_1 : f32 to vector<16x1xf32>
    %4 = arith.divf %2, %3 : vector<16x1xf32>
    %5 = vector.broadcast %4 : vector<16x1xf32> to vector<16x32xf32>
    %6 = arith.subf %0, %5 : vector<16x32xf32>
    %7 = arith.mulf %6, %6 : vector<16x32xf32>
    %cst_2 = arith.constant dense<0.000000e+00> : vector<16xf32>
    %8 = vector.multi_reduction <add>, %7, %cst_2 [1] : vector<16x32xf32> to vector<16xf32>
    %9 = vector.shape_cast %8 : vector<16xf32> to vector<16x1xf32>
    %cst_3 = arith.constant 3.200000e+01 : f32
    %10 = vector.broadcast %cst_3 : f32 to vector<16x1xf32>
    %11 = arith.divf %9, %10 : vector<16x1xf32>
    %cst_4 = arith.constant 9.99999996E-13 : f32
    %12 = vector.broadcast %cst_4 : f32 to vector<16x1xf32>
    %13 = arith.addf %11, %12 : vector<16x1xf32>
    %14 = math.rsqrt %13 : vector<16x1xf32>
    %15 = vector.broadcast %14 : vector<16x1xf32> to vector<16x32xf32>
    %16 = arith.mulf %6, %15 : vector<16x32xf32>
    %c0_5 = arith.constant 0 : index
    %c0_6 = arith.constant 0 : index
    %17 = vector.load %arg1[%c0_5, %c0_6] : memref<1x32xf32, #tpu.memory_space<vmem>>, vector<1x32xf32>
    %18 = vector.broadcast %17 : vector<1x32xf32> to vector<16x32xf32>
    %19 = arith.mulf %16, %18 : vector<16x32xf32>
    %c0_7 = arith.constant 0 : index
    %c0_8 = arith.constant 0 : index
    %20 = vector.load %arg2[%c0_7, %c0_8] : memref<1x32xf32, #tpu.memory_space<vmem>>, vector<1x32xf32>
    %21 = vector.broadcast %20 : vector<1x32xf32> to vector<16x32xf32>
    %22 = arith.addf %19, %21 : vector<16x32xf32>
    %c0_9 = arith.constant 0 : index
    %c0_10 = arith.constant 0 : index
    %23 = vector.load %arg3[%c0_9, %c0_10] : memref<16x32xf32, #tpu.memory_space<vmem>>, vector<16x32xf32>
    tpu.vector_store %arg3[%c0_9, %c0_10], %22 {strides = array<i32>} : memref<16x32xf32, #tpu.memory_space<vmem>>, vector<16x32xf32>,
    return
  }
}

module attributes {stable_mosaic.version = 11 : i64} {
  func.func @_ffn_kernel(%arg0: memref<16x32xf32, #tpu.memory_space<vmem>>, %arg1: memref<32x64xf32, #tpu.memory_space<vmem>>, %arg2: memref<1x64xf32, #tpu.memory_space<vmem>>, %arg3: memref<64x32xf32, #tpu.memory_space<vmem>>, %arg4: memref<1x32xf32, #tpu.memory_space<vmem>>, %arg5: memref<1x32xf32, #tpu.memory_space<vmem>>, %arg6: memref<1x32xf32, #tpu.memory_space<vmem>>, %arg7: memref<16x32xf32, #tpu.memory_space<vmem>>) attributes {dimension_semantics = [], scalar_prefetch = 0 : i64, scratch_operands = 0 : i64, tpu.core_type = #tpu.core_type<tc>} {
    %c0 = arith.constant 0 : index
    %c0_0 = arith.constant 0 : index
    %0 = vector.load %arg0[%c0, %c0_0] : memref<16x32xf32, #tpu.memory_space<vmem>>, vector<16x32xf32>
    %c0_1 = arith.constant 0 : index
    %c0_2 = arith.constant 0 : index
    %1 = vector.load %arg1[%c0_1, %c0_2] : memref<32x64xf32, #tpu.memory_space<vmem>>, vector<32x64xf32>
    %cst = arith.constant dense<0.000000e+00> : vector<16x64xf32>
    %2 = tpu.matmul %0, %1, %cst {dimension_numbers = #tpu.dot_dimension_numbers<[1], [0], [0], [1], [0, 0, 1, 1], [], []>} : vector<16x32xf32>, vector<32x64xf32>, vector<16x64xf32> -> vector<16x64xf32>
    %c0_3 = arith.constant 0 : index
    %c0_4 = arith.constant 0 : index
    %3 = vector.load %arg2[%c0_3, %c0_4] : memref<1x64xf32, #tpu.memory_space<vmem>>, vector<1x64xf32>
    %4 = vector.broadcast %3 : vector<1x64xf32> to vector<16x64xf32>
    %5 = arith.addf %2, %4 : vector<16x64xf32>
    %6 = arith.mulf %5, %5 : vector<16x64xf32>
    %7 = arith.mulf %5, %6 : vector<16x64xf32>
    %cst_5 = arith.constant 4.471500e-02 : f32
    %8 = vector.broadcast %cst_5 : f32 to vector<16x64xf32>
    %9 = arith.mulf %8, %7 : vector<16x64xf32>
    %10 = arith.addf %5, %9 : vector<16x64xf32>
    %cst_6 = arith.constant 0.797884583 : f32
    %11 = vector.broadcast %cst_6 : f32 to vector<16x64xf32>
    %12 = arith.mulf %11, %10 : vector<16x64xf32>
    %13 = math.tanh %12 : vector<16x64xf32>
    %cst_7 = arith.constant 1.000000e+00 : f32
    %14 = vector.broadcast %cst_7 : f32 to vector<16x64xf32>
    %15 = arith.addf %14, %13 : vector<16x64xf32>
    %cst_8 = arith.constant 5.000000e-01 : f32
    %16 = vector.broadcast %cst_8 : f32 to vector<16x64xf32>
    %17 = arith.mulf %16, %15 : vector<16x64xf32>
    %18 = arith.mulf %5, %17 : vector<16x64xf32>
    %c0_9 = arith.constant 0 : index
    %c0_10 = arith.constant 0 : index
    %19 = vector.load %arg3[%c0_9, %c0_10] : memref<64x32xf32, #tpu.memory_space<vmem>>, vector<64x32xf32>
    %cst_11 = arith.constant dense<0.000000e+00> : vector<16x32xf32>
    %20 = tpu.matmul %18, %19, %cst_11 {dimension_numbers = #tpu.dot_dimension_numbers<[1], [0], [0], [1], [0, 0, 1, 1], [], []>} : vector<16x64xf32>, vector<64x32xf32>, vector<16x32xf32> -> vector<16x32xf32>
    %c0_12 = arith.constant 0 : index
    %c0_13 = arith.constant 0 : index
    %21 = vector.load %arg4[%c0_12, %c0_13] : memref<1x32xf32, #tpu.memory_space<vmem>>, vector<1x32xf32>
    %22 = vector.broadcast %21 : vector<1x32xf32> to vector<16x32xf32>
    %23 = arith.addf %20, %22 : vector<16x32xf32>
    %24 = arith.addf %23, %0 : vector<16x32xf32>
    %cst_14 = arith.constant dense<0.000000e+00> : vector<16xf32>
    %25 = vector.multi_reduction <add>, %24, %cst_14 [1] : vector<16x32xf32> to vector<16xf32>
    %26 = vector.shape_cast %25 : vector<16xf32> to vector<16x1xf32>
    %cst_15 = arith.constant 3.200000e+01 : f32
    %27 = vector.broadcast %cst_15 : f32 to vector<16x1xf32>
    %28 = arith.divf %26, %27 : vector<16x1xf32>
    %29 = vector.broadcast %28 : vector<16x1xf32> to vector<16x32xf32>
    %30 = arith.subf %24, %29 : vector<16x32xf32>
    %31 = arith.mulf %30, %30 : vector<16x32xf32>
    %cst_16 = arith.constant dense<0.000000e+00> : vector<16xf32>
    %32 = vector.multi_reduction <add>, %31, %cst_16 [1] : vector<16x32xf32> to vector<16xf32>
    %33 = vector.shape_cast %32 : vector<16xf32> to vector<16x1xf32>
    %cst_17 = arith.constant 3.200000e+01 : f32
    %34 = vector.broadcast %cst_17 : f32 to vector<16x1xf32>
    %35 = arith.divf %33, %34 : vector<16x1xf32>
    %cst_18 = arith.constant 9.99999996E-13 : f32
    %36 = vector.broadcast %cst_18 : f32 to vector<16x1xf32>
    %37 = arith.addf %35, %36 : vector<16x1xf32>
    %38 = math.rsqrt %37 : vector<16x1xf32>
    %39 = vector.broadcast %38 : vector<16x1xf32> to vector<16x32xf32>
    %40 = arith.mulf %30, %39 : vector<16x32xf32>
    %c0_19 = arith.constant 0 : index
    %c0_20 = arith.constant 0 : index
    %41 = vector.load %arg5[%c0_19, %c0_20] : memref<1x32xf32, #tpu.memory_space<vmem>>, vector<1x32xf32>
    %42 = vector.broadcast %41 : vector<1x32xf32> to vector<16x32xf32>
    %43 = arith.mulf %40, %42 : vector<16x32xf32>
    %c0_21 = arith.constant 0 : index
    %c0_22 = arith.constant 0 : index
    %44 = vector.load %arg6[%c0_21, %c0_22] : memref<1x32xf32, #tpu.memory_space<vmem>>, vector<1x32xf32>
    %45 = vector.broadcast %44 : vector<1x32xf32> to vector<16x32xf32>
    %46 = arith.addf %43, %45 : vector<16x32xf32>
    %c0_23 = arith.constant 0 : index
    %c0_24 = arith.constant 0 : index
    %47 = vector.load %arg7[%c0_23, %c0_24] : memref<16x32xf32, #tpu.memory_space<vmem>>, vector<16x32xf32>
    tpu.vector_store %arg7[%c0_23, %c0_24], %46 {strides = array<i32>} : memref<16x32xf32, #tpu.memory_space<vmem>>, vector<16x32xf32>,
    return
  }
}

module attributes {stable_mosaic.version = 11 : i64} {
  func.func @_attn_block_kernel(%arg0: i32, %arg1: memref<8x32xf32, #tpu.memory_space<vmem>>, %arg2: memref<32x96xf32, #tpu.memory_space<vmem>>, %arg3: memref<1x96xf32, #tpu.memory_space<vmem>>, %arg4: memref<1x1x8xf32, #tpu.memory_space<vmem>>, %arg5: memref<32x32xf32, #tpu.memory_space<vmem>>, %arg6: memref<1x32xf32, #tpu.memory_space<vmem>>, %arg7: memref<1x32xf32, #tpu.memory_space<vmem>>, %arg8: memref<1x32xf32, #tpu.memory_space<vmem>>, %arg9: memref<8x32xf32, #tpu.memory_space<vmem>>, %arg10: memref<8x96xf32, #tpu.memory_space<vmem>>) attributes {dimension_semantics = [#tpu.dimension_semantics<parallel>], iteration_bounds = array<i64: 2>, scalar_prefetch = 0 : i64, scratch_operands = 1 : i64, tpu.core_type = #tpu.core_type<tc>, window_params = [{transform_indices = @transform_0, window_bounds = array<i64: 8, 32>}, {pipeline_mode = #tpu.pipeline_mode<synchronous>, transform_indices = @transform_1, window_bounds = array<i64: 32, 96>}, {pipeline_mode = #tpu.pipeline_mode<synchronous>, transform_indices = @transform_2, window_bounds = array<i64: 1, 96>}, {transform_indices = @transform_3, window_bounds = array<i64: 1, 1, 8>}, {pipeline_mode = #tpu.pipeline_mode<synchronous>, transform_indices = @transform_4, window_bounds = array<i64: 32, 32>}, {pipeline_mode = #tpu.pipeline_mode<synchronous>, transform_indices = @transform_5, window_bounds = array<i64: 1, 32>}, {pipeline_mode = #tpu.pipeline_mode<synchronous>, transform_indices = @transform_6, window_bounds = array<i64: 1, 32>}, {pipeline_mode = #tpu.pipeline_mode<synchronous>, transform_indices = @transform_7, window_bounds = array<i64: 1, 32>}, {transform_indices = @transform_8, window_bounds = array<i64: 8, 32>}]} {
    %c0 = arith.constant 0 : index
    %c0_0 = arith.constant 0 : index
    %0 = vector.load %arg1[%c0, %c0_0] : memref<8x32xf32, #tpu.memory_space<vmem>>, vector<8x32xf32>
    %c0_1 = arith.constant 0 : index
    %c0_2 = arith.constant 0 : index
    %1 = vector.load %arg2[%c0_1, %c0_2] : memref<32x96xf32, #tpu.memory_space<vmem>>, vector<32x96xf32>
    %cst = arith.constant dense<0.000000e+00> : vector<8x96xf32>
    %2 = tpu.matmul %0, %1, %cst {dimension_numbers = #tpu.dot_dimension_numbers<[1], [0], [0], [1], [0, 0, 1, 1], [], []>} : vector<8x32xf32>, vector<32x96xf32>, vector<8x96xf32> -> vector<8x96xf32>
    %c0_3 = arith.constant 0 : index
    %c0_4 = arith.constant 0 : index
    %3 = vector.load %arg3[%c0_3, %c0_4] : memref<1x96xf32, #tpu.memory_space<vmem>>, vector<1x96xf32>
    %4 = vector.broadcast %3 : vector<1x96xf32> to vector<8x96xf32>
    %5 = arith.addf %2, %4 : vector<8x96xf32>
    %c0_5 = arith.constant 0 : index
    %c0_6 = arith.constant 0 : index
    %6 = vector.load %arg10[%c0_5, %c0_6] : memref<8x96xf32, #tpu.memory_space<vmem>>, vector<8x96xf32>
    tpu.vector_store %arg10[%c0_5, %c0_6], %5 {strides = array<i32>} : memref<8x96xf32, #tpu.memory_space<vmem>>, vector<8x96xf32>,
    %c0_7 = arith.constant 0 : index
    %c0_8 = arith.constant 0 : index
    %c0_9 = arith.constant 0 : index
    %7 = vector.load %arg4[%c0_7, %c0_8, %c0_9] : memref<1x1x8xf32, #tpu.memory_space<vmem>>, vector<1x1x8xf32>
    %8 = vector.shape_cast %7 : vector<1x1x8xf32> to vector<1x8xf32>
    %c0_10 = arith.constant 0 : index
    %c0_11 = arith.constant 0 : index
    %9 = vector.load %arg6[%c0_10, %c0_11] : memref<1x32xf32, #tpu.memory_space<vmem>>, vector<1x32xf32>
    %10 = vector.broadcast %9 : vector<1x32xf32> to vector<8x32xf32>
    %11 = arith.addf %10, %0 : vector<8x32xf32>
    %c0_12 = arith.constant 0 : index
    %c0_13 = arith.constant 0 : index
    %12 = vector.load %arg10[%c0_12, %c0_13] : memref<8x96xf32, #tpu.memory_space<vmem>>, vector<8x8xf32>
    %c0_14 = arith.constant 0 : index
    %c32 = arith.constant 32 : index
    %13 = vector.load %arg10[%c0_14, %c32] : memref<8x96xf32, #tpu.memory_space<vmem>>, vector<8x8xf32>
    %c0_15 = arith.constant 0 : index
    %c64 = arith.constant 64 : index
    %14 = vector.load %arg10[%c0_15, %c64] : memref<8x96xf32, #tpu.memory_space<vmem>>, vector<8x8xf32>
    %cst_16 = arith.constant dense<0.000000e+00> : vector<8x8xf32>
    %15 = tpu.matmul %12, %13, %cst_16 {dimension_numbers = #tpu.dot_dimension_numbers<[1], [1], [0], [0], [0, 0, 1, 0], [], []>} : vector<8x8xf32>, vector<8x8xf32>, vector<8x8xf32> -> vector<8x8xf32>
    %cst_17 = arith.constant 0.353553385 : f32
    %16 = vector.broadcast %cst_17 : f32 to vector<8x8xf32>
    %17 = arith.mulf %15, %16 : vector<8x8xf32>
    %18 = vector.broadcast %8 : vector<1x8xf32> to vector<8x8xf32>
    %19 = arith.addf %17, %18 : vector<8x8xf32>
    %cst_18 = arith.constant dense<0xFF800000> : vector<8xf32>
    %20 = vector.multi_reduction <maximumf>, %19, %cst_18 [1] : vector<8x8xf32> to vector<8xf32>
    %21 = vector.shape_cast %20 : vector<8xf32> to vector<8x1xf32>
    %22 = vector.broadcast %21 : vector<8x1xf32> to vector<8x8xf32>
    %23 = arith.subf %19, %22 : vector<8x8xf32>
    %24 = math.exp %23 : vector<8x8xf32>
    %cst_19 = arith.constant dense<0.000000e+00> : vector<8xf32>
    %25 = vector.multi_reduction <add>, %24, %cst_19 [1] : vector<8x8xf32> to vector<8xf32>
    %26 = vector.shape_cast %25 : vector<8xf32> to vector<8x1xf32>
    %cst_20 = arith.constant dense<0.000000e+00> : vector<8x8xf32>
    %27 = tpu.matmul %24, %14, %cst_20 {dimension_numbers = #tpu.dot_dimension_numbers<[1], [0], [0], [1], [0, 0, 1, 1], [], []>} : vector<8x8xf32>, vector<8x8xf32>, vector<8x8xf32> -> vector<8x8xf32>
    %28 = tpu.reciprocal %26 {approx = true} : vector<8x1xf32> -> vector<8x1xf32>
    %29 = vector.broadcast %28 : vector<8x1xf32> to vector<8x8xf32>
    %30 = arith.mulf %27, %29 : vector<8x8xf32>
    %c0_21 = arith.constant 0 : index
    %c0_22 = arith.constant 0 : index
    %31 = vector.load %arg5[%c0_21, %c0_22] : memref<32x32xf32, #tpu.memory_space<vmem>>, vector<8x32xf32>
    %cst_23 = arith.constant dense<0.000000e+00> : vector<8x32xf32>
    %32 = tpu.matmul %30, %31, %cst_23 {dimension_numbers = #tpu.dot_dimension_numbers<[1], [0], [0], [1], [0, 0, 1, 1], [], []>} : vector<8x8xf32>, vector<8x32xf32>, vector<8x32xf32> -> vector<8x32xf32>
    %33 = arith.addf %11, %32 : vector<8x32xf32>
    %c0_24 = arith.constant 0 : index
    %c8 = arith.constant 8 : index
    %34 = vector.load %arg10[%c0_24, %c8] : memref<8x96xf32, #tpu.memory_space<vmem>>, vector<8x8xf32>
    %c0_25 = arith.constant 0 : index
    %c40 = arith.constant 40 : index
    %35 = vector.load %arg10[%c0_25, %c40] : memref<8x96xf32, #tpu.memory_space<vmem>>, vector<8x8xf32>
    %c0_26 = arith.constant 0 : index
    %c72 = arith.constant 72 : index
    %36 = vector.load %arg10[%c0_26, %c72] : memref<8x96xf32, #tpu.memory_space<vmem>>, vector<8x8xf32>
    %cst_27 = arith.constant dense<0.000000e+00> : vector<8x8xf32>
    %37 = tpu.matmul %34, %35, %cst_27 {dimension_numbers = #tpu.dot_dimension_numbers<[1], [1], [0], [0], [0, 0, 1, 0], [], []>} : vector<8x8xf32>, vector<8x8xf32>, vector<8x8xf32> -> vector<8x8xf32>
    %cst_28 = arith.constant 0.353553385 : f32
    %38 = vector.broadcast %cst_28 : f32 to vector<8x8xf32>
    %39 = arith.mulf %37, %38 : vector<8x8xf32>
    %40 = vector.broadcast %8 : vector<1x8xf32> to vector<8x8xf32>
    %41 = arith.addf %39, %40 : vector<8x8xf32>
    %cst_29 = arith.constant dense<0xFF800000> : vector<8xf32>
    %42 = vector.multi_reduction <maximumf>, %41, %cst_29 [1] : vector<8x8xf32> to vector<8xf32>
    %43 = vector.shape_cast %42 : vector<8xf32> to vector<8x1xf32>
    %44 = vector.broadcast %43 : vector<8x1xf32> to vector<8x8xf32>
    %45 = arith.subf %41, %44 : vector<8x8xf32>
    %46 = math.exp %45 : vector<8x8xf32>
    %cst_30 = arith.constant dense<0.000000e+00> : vector<8xf32>
    %47 = vector.multi_reduction <add>, %46, %cst_30 [1] : vector<8x8xf32> to vector<8xf32>
    %48 = vector.shape_cast %47 : vector<8xf32> to vector<8x1xf32>
    %cst_31 = arith.constant dense<0.000000e+00> : vector<8x8xf32>
    %49 = tpu.matmul %46, %36, %cst_31 {dimension_numbers = #tpu.dot_dimension_numbers<[1], [0], [0], [1], [0, 0, 1, 1], [], []>} : vector<8x8xf32>, vector<8x8xf32>, vector<8x8xf32> -> vector<8x8xf32>
    %50 = tpu.reciprocal %48 {approx = true} : vector<8x1xf32> -> vector<8x1xf32>
    %51 = vector.broadcast %50 : vector<8x1xf32> to vector<8x8xf32>
    %52 = arith.mulf %49, %51 : vector<8x8xf32>
    %c8_32 = arith.constant 8 : index
    %c0_33 = arith.constant 0 : index
    %53 = vector.load %arg5[%c8_32, %c0_33] : memref<32x32xf32, #tpu.memory_space<vmem>>, vector<8x32xf32>
    %cst_34 = arith.constant dense<0.000000e+00> : vector<8x32xf32>
    %54 = tpu.matmul %52, %53, %cst_34 {dimension_numbers = #tpu.dot_dimension_numbers<[1], [0], [0], [1], [0, 0, 1, 1], [], []>} : vector<8x8xf32>, vector<8x32xf32>, vector<8x32xf32> -> vector<8x32xf32>
    %55 = arith.addf %33, %54 : vector<8x32xf32>
    %c0_35 = arith.constant 0 : index
    %c16 = arith.constant 16 : index
    %56 = vector.load %arg10[%c0_35, %c16] : memref<8x96xf32, #tpu.memory_space<vmem>>, vector<8x8xf32>
    %c0_36 = arith.constant 0 : index
    %c48 = arith.constant 48 : index
    %57 = vector.load %arg10[%c0_36, %c48] : memref<8x96xf32, #tpu.memory_space<vmem>>, vector<8x8xf32>
    %c0_37 = arith.constant 0 : index
    %c80 = arith.constant 80 : index
    %58 = vector.load %arg10[%c0_37, %c80] : memref<8x96xf32, #tpu.memory_space<vmem>>, vector<8x8xf32>
    %cst_38 = arith.constant dense<0.000000e+00> : vector<8x8xf32>
    %59 = tpu.matmul %56, %57, %cst_38 {dimension_numbers = #tpu.dot_dimension_numbers<[1], [1], [0], [0], [0, 0, 1, 0], [], []>} : vector<8x8xf32>, vector<8x8xf32>, vector<8x8xf32> -> vector<8x8xf32>
    %cst_39 = arith.constant 0.353553385 : f32
    %60 = vector.broadcast %cst_39 : f32 to vector<8x8xf32>
    %61 = arith.mulf %59, %60 : vector<8x8xf32>
    %62 = vector.broadcast %8 : vector<1x8xf32> to vector<8x8xf32>
    %63 = arith.addf %61, %62 : vector<8x8xf32>
    %cst_40 = arith.constant dense<0xFF800000> : vector<8xf32>
    %64 = vector.multi_reduction <maximumf>, %63, %cst_40 [1] : vector<8x8xf32> to vector<8xf32>
    %65 = vector.shape_cast %64 : vector<8xf32> to vector<8x1xf32>
    %66 = vector.broadcast %65 : vector<8x1xf32> to vector<8x8xf32>
    %67 = arith.subf %63, %66 : vector<8x8xf32>
    %68 = math.exp %67 : vector<8x8xf32>
    %cst_41 = arith.constant dense<0.000000e+00> : vector<8xf32>
    %69 = vector.multi_reduction <add>, %68, %cst_41 [1] : vector<8x8xf32> to vector<8xf32>
    %70 = vector.shape_cast %69 : vector<8xf32> to vector<8x1xf32>
    %cst_42 = arith.constant dense<0.000000e+00> : vector<8x8xf32>
    %71 = tpu.matmul %68, %58, %cst_42 {dimension_numbers = #tpu.dot_dimension_numbers<[1], [0], [0], [1], [0, 0, 1, 1], [], []>} : vector<8x8xf32>, vector<8x8xf32>, vector<8x8xf32> -> vector<8x8xf32>
    %72 = tpu.reciprocal %70 {approx = true} : vector<8x1xf32> -> vector<8x1xf32>
    %73 = vector.broadcast %72 : vector<8x1xf32> to vector<8x8xf32>
    %74 = arith.mulf %71, %73 : vector<8x8xf32>
    %c16_43 = arith.constant 16 : index
    %c0_44 = arith.constant 0 : index
    %75 = vector.load %arg5[%c16_43, %c0_44] : memref<32x32xf32, #tpu.memory_space<vmem>>, vector<8x32xf32>
    %cst_45 = arith.constant dense<0.000000e+00> : vector<8x32xf32>
    %76 = tpu.matmul %74, %75, %cst_45 {dimension_numbers = #tpu.dot_dimension_numbers<[1], [0], [0], [1], [0, 0, 1, 1], [], []>} : vector<8x8xf32>, vector<8x32xf32>, vector<8x32xf32> -> vector<8x32xf32>
    %77 = arith.addf %55, %76 : vector<8x32xf32>
    %c0_46 = arith.constant 0 : index
    %c24 = arith.constant 24 : index
    %78 = vector.load %arg10[%c0_46, %c24] : memref<8x96xf32, #tpu.memory_space<vmem>>, vector<8x8xf32>
    %c0_47 = arith.constant 0 : index
    %c56 = arith.constant 56 : index
    %79 = vector.load %arg10[%c0_47, %c56] : memref<8x96xf32, #tpu.memory_space<vmem>>, vector<8x8xf32>
    %c0_48 = arith.constant 0 : index
    %c88 = arith.constant 88 : index
    %80 = vector.load %arg10[%c0_48, %c88] : memref<8x96xf32, #tpu.memory_space<vmem>>, vector<8x8xf32>
    %cst_49 = arith.constant dense<0.000000e+00> : vector<8x8xf32>
    %81 = tpu.matmul %78, %79, %cst_49 {dimension_numbers = #tpu.dot_dimension_numbers<[1], [1], [0], [0], [0, 0, 1, 0], [], []>} : vector<8x8xf32>, vector<8x8xf32>, vector<8x8xf32> -> vector<8x8xf32>
    %cst_50 = arith.constant 0.353553385 : f32
    %82 = vector.broadcast %cst_50 : f32 to vector<8x8xf32>
    %83 = arith.mulf %81, %82 : vector<8x8xf32>
    %84 = vector.broadcast %8 : vector<1x8xf32> to vector<8x8xf32>
    %85 = arith.addf %83, %84 : vector<8x8xf32>
    %cst_51 = arith.constant dense<0xFF800000> : vector<8xf32>
    %86 = vector.multi_reduction <maximumf>, %85, %cst_51 [1] : vector<8x8xf32> to vector<8xf32>
    %87 = vector.shape_cast %86 : vector<8xf32> to vector<8x1xf32>
    %88 = vector.broadcast %87 : vector<8x1xf32> to vector<8x8xf32>
    %89 = arith.subf %85, %88 : vector<8x8xf32>
    %90 = math.exp %89 : vector<8x8xf32>
    %cst_52 = arith.constant dense<0.000000e+00> : vector<8xf32>
    %91 = vector.multi_reduction <add>, %90, %cst_52 [1] : vector<8x8xf32> to vector<8xf32>
    %92 = vector.shape_cast %91 : vector<8xf32> to vector<8x1xf32>
    %cst_53 = arith.constant dense<0.000000e+00> : vector<8x8xf32>
    %93 = tpu.matmul %90, %80, %cst_53 {dimension_numbers = #tpu.dot_dimension_numbers<[1], [0], [0], [1], [0, 0, 1, 1], [], []>} : vector<8x8xf32>, vector<8x8xf32>, vector<8x8xf32> -> vector<8x8xf32>
    %94 = tpu.reciprocal %92 {approx = true} : vector<8x1xf32> -> vector<8x1xf32>
    %95 = vector.broadcast %94 : vector<8x1xf32> to vector<8x8xf32>
    %96 = arith.mulf %93, %95 : vector<8x8xf32>
    %c24_54 = arith.constant 24 : index
    %c0_55 = arith.constant 0 : index
    %97 = vector.load %arg5[%c24_54, %c0_55] : memref<32x32xf32, #tpu.memory_space<vmem>>, vector<8x32xf32>
    %cst_56 = arith.constant dense<0.000000e+00> : vector<8x32xf32>
    %98 = tpu.matmul %96, %97, %cst_56 {dimension_numbers = #tpu.dot_dimension_numbers<[1], [0], [0], [1], [0, 0, 1, 1], [], []>} : vector<8x8xf32>, vector<8x32xf32>, vector<8x32xf32> -> vector<8x32xf32>
    %99 = arith.addf %77, %98 : vector<8x32xf32>
    %cst_57 = arith.constant dense<0.000000e+00> : vector<8xf32>
    %100 = vector.multi_reduction <add>, %99, %cst_57 [1] : vector<8x32xf32> to vector<8xf32>
    %101 = vector.shape_cast %100 : vector<8xf32> to vector<8x1xf32>
    %cst_58 = arith.constant 3.200000e+01 : f32
    %102 = vector.broadcast %cst_58 : f32 to vector<8x1xf32>
    %103 = arith.divf %101, %102 : vector<8x1xf32>
    %104 = vector.broadcast %103 : vector<8x1xf32> to vector<8x32xf32>
    %105 = arith.subf %99, %104 : vector<8x32xf32>
    %106 = arith.mulf %105, %105 : vector<8x32xf32>
    %cst_59 = arith.constant dense<0.000000e+00> : vector<8xf32>
    %107 = vector.multi_reduction <add>, %106, %cst_59 [1] : vector<8x32xf32> to vector<8xf32>
    %108 = vector.shape_cast %107 : vector<8xf32> to vector<8x1xf32>
    %cst_60 = arith.constant 3.200000e+01 : f32
    %109 = vector.broadcast %cst_60 : f32 to vector<8x1xf32>
    %110 = arith.divf %108, %109 : vector<8x1xf32>
    %cst_61 = arith.constant 9.99999996E-13 : f32
    %111 = vector.broadcast %cst_61 : f32 to vector<8x1xf32>
    %112 = arith.addf %110, %111 : vector<8x1xf32>
    %113 = math.rsqrt %112 : vector<8x1xf32>
    %114 = vector.broadcast %113 : vector<8x1xf32> to vector<8x32xf32>
    %115 = arith.mulf %105, %114 : vector<8x32xf32>
    %c0_62 = arith.constant 0 : index
    %c0_63 = arith.constant 0 : index
    %116 = vector.load %arg7[%c0_62, %c0_63] : memref<1x32xf32, #tpu.memory_space<vmem>>, vector<1x32xf32>
    %117 = vector.broadcast %116 : vector<1x32xf32> to vector<8x32xf32>
    %118 = arith.mulf %115, %117 : vector<8x32xf32>
    %c0_64 = arith.constant 0 : index
    %c0_65 = arith.constant 0 : index
    %119 = vector.load %arg8[%c0_64, %c0_65] : memref<1x32xf32, #tpu.memory_space<vmem>>, vector<1x32xf32>
    %120 = vector.broadcast %119 : vector<1x32xf32> to vector<8x32xf32>
    %121 = arith.addf %118, %120 : vector<8x32xf32>
    %c0_66 = arith.constant 0 : index
    %c0_67 = arith.constant 0 : index
    %122 = vector.load %arg9[%c0_66, %c0_67] : memref<8x32xf32, #tpu.memory_space<vmem>>, vector<8x32xf32>
    tpu.vector_store %arg9[%c0_66, %c0_67], %121 {strides = array<i32>} : memref<8x32xf32, #tpu.memory_space<vmem>>, vector<8x32xf32>,
    return
  }
  func.func @transform_0(%arg0: i32) -> (i32, i32) {
    %c0_i32 = arith.constant 0 : i32
    %c0_i32_0 = arith.constant 0 : i32
    return %arg0, %c0_i32 : i32, i32
  }
  func.func @transform_1(%arg0: i32) -> (i32, i32) {
    %c0_i32 = arith.constant 0 : i32
    %c0_i32_0 = arith.constant 0 : i32
    %c0_i32_1 = arith.constant 0 : i32
    return %c0_i32, %c0_i32_0 : i32, i32
  }
  func.func @transform_2(%arg0: i32) -> (i32, i32) {
    %c0_i32 = arith.constant 0 : i32
    %c0_i32_0 = arith.constant 0 : i32
    %c0_i32_1 = arith.constant 0 : i32
    return %c0_i32, %c0_i32_0 : i32, i32
  }
  func.func @transform_3(%arg0: i32) -> (i32, i32, i32) {
    %c0_i32 = arith.constant 0 : i32
    %c0_i32_0 = arith.constant 0 : i32
    %c0_i32_1 = arith.constant 0 : i32
    return %arg0, %c0_i32, %c0_i32_0 : i32, i32, i32
  }
  func.func @transform_4(%arg0: i32) -> (i32, i32) {
    %c0_i32 = arith.constant 0 : i32
    %c0_i32_0 = arith.constant 0 : i32
    %c0_i32_1 = arith.constant 0 : i32
    return %c0_i32, %c0_i32_0 : i32, i32
  }
  func.func @transform_5(%arg0: i32) -> (i32, i32) {
    %c0_i32 = arith.constant 0 : i32
    %c0_i32_0 = arith.constant 0 : i32
    %c0_i32_1 = arith.constant 0 : i32
    return %c0_i32, %c0_i32_0 : i32, i32
  }
  func.func @transform_6(%arg0: i32) -> (i32, i32) {
    %c0_i32 = arith.constant 0 : i32
    %c0_i32_0 = arith.constant 0 : i32
    %c0_i32_1 = arith.constant 0 : i32
    return %c0_i32, %c0_i32_0 : i32, i32
  }
  func.func @transform_7(%arg0: i32) -> (i32, i32) {
    %c0_i32 = arith.constant 0 : i32
    %c0_i32_0 = arith.constant 0 : i32
    %c0_i32_1 = arith.constant 0 : i32
    return %c0_i32, %c0_i32_0 : i32, i32
  }
  func.func @transform_8(%arg0: i32) -> (i32, i32) {
    %c0_i32 = arith.constant 0 : i32
    %c0_i32_0 = arith.constant 0 : i32
    return %arg0, %c0_i32 : i32, i32
  }
}

module attributes {stable_mosaic.version = 11 : i64} {
  func.func @_ffn_kernel(%arg0: memref<16x32xf32, #tpu.memory_space<vmem>>, %arg1: memref<32x64xf32, #tpu.memory_space<vmem>>, %arg2: memref<1x64xf32, #tpu.memory_space<vmem>>, %arg3: memref<64x32xf32, #tpu.memory_space<vmem>>, %arg4: memref<1x32xf32, #tpu.memory_space<vmem>>, %arg5: memref<1x32xf32, #tpu.memory_space<vmem>>, %arg6: memref<1x32xf32, #tpu.memory_space<vmem>>, %arg7: memref<32x3xf32, #tpu.memory_space<vmem>>, %arg8: memref<1x3xf32, #tpu.memory_space<vmem>>, %arg9: memref<16x3xf32, #tpu.memory_space<vmem>>) attributes {dimension_semantics = [], scalar_prefetch = 0 : i64, scratch_operands = 0 : i64, tpu.core_type = #tpu.core_type<tc>} {
    %c0 = arith.constant 0 : index
    %c0_0 = arith.constant 0 : index
    %0 = vector.load %arg0[%c0, %c0_0] : memref<16x32xf32, #tpu.memory_space<vmem>>, vector<16x32xf32>
    %c0_1 = arith.constant 0 : index
    %c0_2 = arith.constant 0 : index
    %1 = vector.load %arg1[%c0_1, %c0_2] : memref<32x64xf32, #tpu.memory_space<vmem>>, vector<32x64xf32>
    %cst = arith.constant dense<0.000000e+00> : vector<16x64xf32>
    %2 = tpu.matmul %0, %1, %cst {dimension_numbers = #tpu.dot_dimension_numbers<[1], [0], [0], [1], [0, 0, 1, 1], [], []>} : vector<16x32xf32>, vector<32x64xf32>, vector<16x64xf32> -> vector<16x64xf32>
    %c0_3 = arith.constant 0 : index
    %c0_4 = arith.constant 0 : index
    %3 = vector.load %arg2[%c0_3, %c0_4] : memref<1x64xf32, #tpu.memory_space<vmem>>, vector<1x64xf32>
    %4 = vector.broadcast %3 : vector<1x64xf32> to vector<16x64xf32>
    %5 = arith.addf %2, %4 : vector<16x64xf32>
    %6 = arith.mulf %5, %5 : vector<16x64xf32>
    %7 = arith.mulf %5, %6 : vector<16x64xf32>
    %cst_5 = arith.constant 4.471500e-02 : f32
    %8 = vector.broadcast %cst_5 : f32 to vector<16x64xf32>
    %9 = arith.mulf %8, %7 : vector<16x64xf32>
    %10 = arith.addf %5, %9 : vector<16x64xf32>
    %cst_6 = arith.constant 0.797884583 : f32
    %11 = vector.broadcast %cst_6 : f32 to vector<16x64xf32>
    %12 = arith.mulf %11, %10 : vector<16x64xf32>
    %13 = math.tanh %12 : vector<16x64xf32>
    %cst_7 = arith.constant 1.000000e+00 : f32
    %14 = vector.broadcast %cst_7 : f32 to vector<16x64xf32>
    %15 = arith.addf %14, %13 : vector<16x64xf32>
    %cst_8 = arith.constant 5.000000e-01 : f32
    %16 = vector.broadcast %cst_8 : f32 to vector<16x64xf32>
    %17 = arith.mulf %16, %15 : vector<16x64xf32>
    %18 = arith.mulf %5, %17 : vector<16x64xf32>
    %c0_9 = arith.constant 0 : index
    %c0_10 = arith.constant 0 : index
    %19 = vector.load %arg3[%c0_9, %c0_10] : memref<64x32xf32, #tpu.memory_space<vmem>>, vector<64x32xf32>
    %cst_11 = arith.constant dense<0.000000e+00> : vector<16x32xf32>
    %20 = tpu.matmul %18, %19, %cst_11 {dimension_numbers = #tpu.dot_dimension_numbers<[1], [0], [0], [1], [0, 0, 1, 1], [], []>} : vector<16x64xf32>, vector<64x32xf32>, vector<16x32xf32> -> vector<16x32xf32>
    %c0_12 = arith.constant 0 : index
    %c0_13 = arith.constant 0 : index
    %21 = vector.load %arg4[%c0_12, %c0_13] : memref<1x32xf32, #tpu.memory_space<vmem>>, vector<1x32xf32>
    %22 = vector.broadcast %21 : vector<1x32xf32> to vector<16x32xf32>
    %23 = arith.addf %20, %22 : vector<16x32xf32>
    %24 = arith.addf %23, %0 : vector<16x32xf32>
    %cst_14 = arith.constant dense<0.000000e+00> : vector<16xf32>
    %25 = vector.multi_reduction <add>, %24, %cst_14 [1] : vector<16x32xf32> to vector<16xf32>
    %26 = vector.shape_cast %25 : vector<16xf32> to vector<16x1xf32>
    %cst_15 = arith.constant 3.200000e+01 : f32
    %27 = vector.broadcast %cst_15 : f32 to vector<16x1xf32>
    %28 = arith.divf %26, %27 : vector<16x1xf32>
    %29 = vector.broadcast %28 : vector<16x1xf32> to vector<16x32xf32>
    %30 = arith.subf %24, %29 : vector<16x32xf32>
    %31 = arith.mulf %30, %30 : vector<16x32xf32>
    %cst_16 = arith.constant dense<0.000000e+00> : vector<16xf32>
    %32 = vector.multi_reduction <add>, %31, %cst_16 [1] : vector<16x32xf32> to vector<16xf32>
    %33 = vector.shape_cast %32 : vector<16xf32> to vector<16x1xf32>
    %cst_17 = arith.constant 3.200000e+01 : f32
    %34 = vector.broadcast %cst_17 : f32 to vector<16x1xf32>
    %35 = arith.divf %33, %34 : vector<16x1xf32>
    %cst_18 = arith.constant 9.99999996E-13 : f32
    %36 = vector.broadcast %cst_18 : f32 to vector<16x1xf32>
    %37 = arith.addf %35, %36 : vector<16x1xf32>
    %38 = math.rsqrt %37 : vector<16x1xf32>
    %39 = vector.broadcast %38 : vector<16x1xf32> to vector<16x32xf32>
    %40 = arith.mulf %30, %39 : vector<16x32xf32>
    %c0_19 = arith.constant 0 : index
    %c0_20 = arith.constant 0 : index
    %41 = vector.load %arg5[%c0_19, %c0_20] : memref<1x32xf32, #tpu.memory_space<vmem>>, vector<1x32xf32>
    %42 = vector.broadcast %41 : vector<1x32xf32> to vector<16x32xf32>
    %43 = arith.mulf %40, %42 : vector<16x32xf32>
    %c0_21 = arith.constant 0 : index
    %c0_22 = arith.constant 0 : index
    %44 = vector.load %arg6[%c0_21, %c0_22] : memref<1x32xf32, #tpu.memory_space<vmem>>, vector<1x32xf32>
    %45 = vector.broadcast %44 : vector<1x32xf32> to vector<16x32xf32>
    %46 = arith.addf %43, %45 : vector<16x32xf32>
    %c0_23 = arith.constant 0 : index
    %c0_24 = arith.constant 0 : index
    %47 = vector.load %arg7[%c0_23, %c0_24] : memref<32x3xf32, #tpu.memory_space<vmem>>, vector<32x3xf32>
    %cst_25 = arith.constant dense<0.000000e+00> : vector<16x3xf32>
    %48 = tpu.matmul %46, %47, %cst_25 {dimension_numbers = #tpu.dot_dimension_numbers<[1], [0], [0], [1], [0, 0, 1, 1], [], []>} : vector<16x32xf32>, vector<32x3xf32>, vector<16x3xf32> -> vector<16x3xf32>
    %c0_26 = arith.constant 0 : index
    %c0_27 = arith.constant 0 : index
    %49 = vector.load %arg8[%c0_26, %c0_27] : memref<1x3xf32, #tpu.memory_space<vmem>>, vector<1x3xf32>
    %50 = vector.broadcast %49 : vector<1x3xf32> to vector<16x3xf32>
    %51 = arith.addf %48, %50 : vector<16x3xf32>
    %c0_28 = arith.constant 0 : index
    %c0_29 = arith.constant 0 : index
    %52 = vector.load %arg9[%c0_28, %c0_29] : memref<16x3xf32, #tpu.memory_space<vmem>>, vector<16x3xf32>
    tpu.vector_store %arg9[%c0_28, %c0_29], %51 {strides = array<i32>} : memref<16x3xf32, #tpu.memory_space<vmem>>, vector<16x3xf32>,
    return
  }
}

</mosaic_0001>

<llo_original>
// kernel: forward.5
$region0: #{forward.5}
  #allocation0 [shape = 'u32[]', space=smem, size = 0x4, offset = 0x4, fixed_abs, tag = 'smem constant byte address 0x4 - core index']
  #allocation1 [shape = 'u32[144,128]{1,0:T(1,128)}', space=vmem, size = 0x12000, scoped, tag = 'internal scratch']
  %s0 = inlined_call_operand.vmem [shape: f32[16,32], index: 0, kind: input, shape index: {}]
  %s1 = inlined_call_operand.vmem [shape: f32[1,32], index: 1, kind: input, shape index: {}]
  %s2 = inlined_call_operand.vmem [shape: f32[1,32], index: 2, kind: input, shape index: {}]
  %s3 = inlined_call_operand.vmem [shape: f32[16,32], index: 3, kind: output, shape index: {}]
  %s4 = sld [smem:[#allocation0]]
  $region22: #{forward.5} parent=0
    _
  %s6 = ssub.s32 1, %s4
  %s7 = scalar_select 0, %s6, %s4
  // Predicated region
  $region2: #{forward.5} parent=0 // pred_check
    _
  $region3: #{forward.5} parent=0 // pred_check_branch
    %9 = sbr.rel (0) target = $region5
  $region4: #{forward.5} parent=0 // pred_region
    _
  $region5: #{forward.5} parent=0 // pred_fallthru
    _
  // Predicated region
  $region6: #{forward.5} parent=0 // pred_check
    _
  $region7: #{forward.5} parent=0 // pred_check_branch
    %11 = sbr.rel (0) target = $region9
  $region8: #{forward.5} parent=0 // pred_region
    _
  $region9: #{forward.5} parent=0 // pred_fallthru
    _
  // Predicated region
  $region10: #{forward.5} parent=0 // pred_check
    _
  $region11: #{forward.5} parent=0 // pred_check_branch
    %13 = sbr.rel (0) target = $region13
  $region12: #{forward.5} parent=0 // pred_region
    _
  $region13: #{forward.5} parent=0 // pred_fallthru
    _
  %v14 = vld [vmem:[%s0] sm:$0xff]
  %v15 = vld [vmem:[%s0 + $0x8] sm:$0xff]
  %vm16 = vcmask 261120
  %v17 = vsel %vm16, %v14, 0.0
  %18 = vadd.xlane.f32.xlu0 %v17
  %v19 = vpop.xlane.xlu0 %18
  %v20 = vsel %vm16, %v15, 0.0
  %21 = vadd.xlane.f32.xlu0 %v20
  %v22 = vpop.xlane.xlu0 %21
  %v23 = vrcp.pop 32.0
  %v24 = vmul.f32 %v19, %v23
  %v25 = vmul.f32 %v22, %v23
  %v26 = vsub.f32 %v14, %v24
  %v27 = vsub.f32 %v15, %v25
  %v28 = vmul.f32 %v26, %v26
  %v29 = vmul.f32 %v27, %v27
  %v30 = vsel %vm16, %v28, 0.0
  %31 = vadd.xlane.f32.xlu0 %v30
  %v32 = vpop.xlane.xlu0 %31
  %v33 = vsel %vm16, %v29, 0.0
  %34 = vadd.xlane.f32.xlu0 %v33
  %v35 = vpop.xlane.xlu0 %34
  %v36 = vmul.f32 %v32, %v23
  %v37 = vmul.f32 %v35, %v23
  %v38 = vadd.f32 %v36, 1e-12
  %v39 = vadd.f32 %v37, 1e-12
  %v40 = vrsqrt.pop %v38
  %v41 = vrsqrt.pop %v39
  %v42 = vmul.f32 %v26, %v40
  %v43 = vmul.f32 %v27, %v41
  %v44 = vld [vmem:[%s1] sm:$0x1]
  %v46 = vlaneseq
  %v47 = vshrl.u32 %v46, 7
  %v48 = vsub.s32 0, %v47
  %v49 = vrot.slane %v44, %v48
  %v51 = vmul.f32 %v42, %v49
  %v52 = vmul.f32 %v43, %v49
  %v53 = vld [vmem:[%s2] sm:$0x1]
  %v55 = vlaneseq
  %v56 = vshrl.u32 %v55, 7
  %v57 = vsub.s32 0, %v56
  %v58 = vrot.slane %v53, %v57
  %v60 = vadd.f32 %v51, %v58
  %v61 = vadd.f32 %v52, %v58
  %62 = vst.msk [vmem:[%s3] sm:$0xff] %vm16, %v60
  %63 = vst.msk [vmem:[%s3 + $0x8] sm:$0xff] %vm16, %v61
  // Predicated region
  $region14: #{forward.5} parent=0 // pred_check
    _
  $region15: #{forward.5} parent=0 // pred_check_branch
    %65 = sbr.rel (0) target = $region17
  $region16: #{forward.5} parent=0 // pred_region
    _
  $region17: #{forward.5} parent=0 // pred_fallthru
    _
  // Predicated region
  $region18: #{forward.5} parent=0 // pred_check
    _
  $region19: #{forward.5} parent=0 // pred_check_branch
    %67 = sbr.rel (0) target = $region21
  $region20: #{forward.5} parent=0 // pred_region
    _
  $region21: #{forward.5} parent=0 // pred_fallthru
    _

// kernel: forward.7
$region0: #{forward.7}
  #allocation0 [shape = 'u32[]', space=smem, size = 0x4, offset = 0x4, fixed_abs, tag = 'smem constant byte address 0x4 - core index']
  #allocation1 [shape = 'u32[144,128]{1,0:T(1,128)}', space=vmem, size = 0x12000, scoped, tag = 'internal scratch']
  %s0 = inlined_call_operand.vmem [shape: f32[16,32], index: 0, kind: input, shape index: {}]
  %s1 = inlined_call_operand.vmem [shape: f32[32,64], index: 1, kind: input, shape index: {}]
  %s2 = inlined_call_operand.vmem [shape: f32[1,64], index: 2, kind: input, shape index: {}]
  %s3 = inlined_call_operand.vmem [shape: f32[64,32], index: 3, kind: input, shape index: {}]
  %s4 = inlined_call_operand.vmem [shape: f32[1,32], index: 4, kind: input, shape index: {}]
  %s5 = inlined_call_operand.vmem [shape: f32[1,32], index: 5, kind: input, shape index: {}]
  %s6 = inlined_call_operand.vmem [shape: f32[1,32], index: 6, kind: input, shape index: {}]
  %s7 = inlined_call_operand.vmem [shape: f32[16,32], index: 7, kind: output, shape index: {}]
  %s8 = sld [smem:[#allocation0]]
  $region38: #{forward.7} parent=0
    _
  %s10 = ssub.s32 1, %s8
  %s11 = scalar_select 0, %s10, %s8
  // Predicated region
  $region2: #{forward.7} parent=0 // pred_check
    _
  $region3: #{forward.7} parent=0 // pred_check_branch
    %13 = sbr.rel (0) target = $region5
  $region4: #{forward.7} parent=0 // pred_region
    _
  $region5: #{forward.7} parent=0 // pred_fallthru
    _
  // Predicated region
  $region6: #{forward.7} parent=0 // pred_check
    _
  $region7: #{forward.7} parent=0 // pred_check_branch
    %15 = sbr.rel (0) target = $region9
  $region8: #{forward.7} parent=0 // pred_region
    _
  $region9: #{forward.7} parent=0 // pred_fallthru
    _
  // Predicated region
  $region10: #{forward.7} parent=0 // pred_check
    _
  $region11: #{forward.7} parent=0 // pred_check_branch
    %17 = sbr.rel (0) target = $region13
  $region12: #{forward.7} parent=0 // pred_region
    _
  $region13: #{forward.7} parent=0 // pred_fallthru
    _
  // Predicated region
  $region14: #{forward.7} parent=0 // pred_check
    _
  $region15: #{forward.7} parent=0 // pred_check_branch
    %19 = sbr.rel (0) target = $region17
  $region16: #{forward.7} parent=0 // pred_region
    _
  $region17: #{forward.7} parent=0 // pred_fallthru
    _
  // Predicated region
  $region18: #{forward.7} parent=0 // pred_check
    _
  $region19: #{forward.7} parent=0 // pred_check_branch
    %21 = sbr.rel (0) target = $region21
  $region20: #{forward.7} parent=0 // pred_region
    _
  $region21: #{forward.7} parent=0 // pred_fallthru
    _
  // Predicated region
  $region22: #{forward.7} parent=0 // pred_check
    _
  $region23: #{forward.7} parent=0 // pred_check_branch
    %23 = sbr.rel (0) target = $region25
  $region24: #{forward.7} parent=0 // pred_region
    _
  $region25: #{forward.7} parent=0 // pred_fallthru
    _
  // Predicated region
  $region26: #{forward.7} parent=0 // pred_check
    _
  $region27: #{forward.7} parent=0 // pred_check_branch
    %25 = sbr.rel (0) target = $region29
  $region28: #{forward.7} parent=0 // pred_region
    _
  $region29: #{forward.7} parent=0 // pred_fallthru
    _
  %v26 = vld [vmem:[%s0] sm:$0xff]
  %v27 = vld [vmem:[%s0 + $0x8] sm:$0xff]
  %v28 = vld [vmem:[%s1] sm:$0xff]
  %v29 = vld [vmem:[%s1 + $0x8] sm:$0xff]
  %v30 = vld [vmem:[%s1 + $0x10] sm:$0xff]
  %v31 = vld [vmem:[%s1 + $0x18] sm:$0xff]
  %v32 = vld [vmem:[%s2] sm:$0x1]
  %v34 = vlaneseq
  %v35 = vshrl.u32 %v34, 7
  %v36 = vsub.s32 0, %v35
  %v37 = vrot.slane %v32, %v36
  %vm39 = vcmask 261120
  %v41 = vsel %vm39, %v26, 0
  %v44 = vsel %vm39, %v27, 0
  %46 = vmatprep.subr.mxu0 0.0
  %47 = vmatpush1.msra.mxu0 %v28
  %48 = vmatprep.subr.mxu0 0.0
  %49 = vmatpush1.msra.mxu0 %v29
  %50 = vmatprep.subr.mxu0 0.0
  %51 = vmatpush1.msra.mxu0 %v30
  %52 = vmatprep.subr.mxu0 0.0
  %53 = vmatpush1.msra.mxu0 %v31
  %54 = vmatprep.subr.mxu0 0.0
  %55 = vmatpush1.msra.mxu0 0.0
  %56 = vmatprep.subr.mxu0 0.0
  %57 = vmatpush1.msra.mxu0 0.0
  %58 = vmatprep.subr.mxu0 0.0
  %59 = vmatpush1.msra.mxu0 0.0
  %60 = vmatprep.subr.mxu0 0.0
  %61 = vmatpush1.msra.mxu0 0.0
  %62 = vmatprep.subr.mxu0 0.0
  %63 = vmatpush1.msra.mxu0 0.0
  %64 = vmatprep.subr.mxu0 0.0
  %65 = vmatpush1.msra.mxu0 0.0
  %66 = vmatprep.subr.mxu0 0.0
  %67 = vmatpush1.msra.mxu0 0.0
  %68 = vmatprep.subr.mxu0 0.0
  %69 = vmatpush1.msra.mxu0 0.0
  %70 = vmatprep.subr.mxu0 0.0
  %71 = vmatpush1.msra.mxu0 0.0
  %72 = vmatprep.subr.mxu0 0.0
  %73 = vmatpush1.msra.mxu0 0.0
  %74 = vmatprep.subr.mxu0 0.0
  %75 = vmatpush1.msra.mxu0 0.0
  %76 = vmatprep.subr.mxu0 0.0
  %77 = vmatpush1.msra.mxu0 0.0
  %78 = vmatprep.subr.mxu0 0.0
  %79 = vmatpush1.msra.mxu0 0.0
  %80 = vmatprep.subr.mxu0 0.0
  %81 = vmatpush1.msra.mxu0 0.0
  %82 = vmatprep.subr.mxu0 0.0
  %83 = vmatpush1.msra.mxu0 0.0
  %84 = vmatprep.subr.mxu0 0.0
  %85 = vmatpush1.msra.mxu0 0.0
  %86 = vmatprep.subr.mxu0 0.0
  %87 = vmatpush1.msra.mxu0 0.0
  %88 = vmatprep.subr.mxu0 0.0
  %89 = vmatpush1.msra.mxu0 0.0
  %90 = vmatprep.subr.mxu0 0.0
  %91 = vmatpush1.msra.mxu0 0.0
  %92 = vmatprep.subr.mxu0 0.0
  %93 = vmatpush1.msra.mxu0 0.0
  %94 = vmatprep.subr.mxu0 0.0
  %95 = vmatpush1.msra.mxu0 0.0
  %96 = vmatprep.subr.mxu0 0.0
  %97 = vmatpush1.msra.mxu0 0.0
  %98 = vmatprep.subr.mxu0 0.0
  %99 = vmatpush1.msra.mxu0 0.0
  %100 = vmatprep.subr.mxu0 0.0
  %101 = vmatpush1.msra.mxu0 0.0
  %102 = vmatprep.subr.mxu0 0.0
  %103 = vmatpush1.msra.mxu0 0.0
  %104 = vmatprep.subr.mxu0 0.0
  %105 = vmatpush1.msra.mxu0 0.0
  %106 = vmatprep.subr.mxu0 0.0
  %107 = vmatpush1.msra.mxu0 0.0
  %108 = vmatprep.subr.mxu0 0.0
  %109 = vmatpush1.msra.mxu0 0.0
  %110 = vmatprep.mubr.f32.mxu0 0.0
  %111 = vmatmul.mubr.f32.gmra.mrb[0].mxu0 %v41
  %v112 = vpop.f32.mrb[0].mxu0
  %v113 = vadd.f32 %v37, %v112
  %v114 = vpop.f32.mrb[0].mxu0
  %115 = vmatprep.mubr.f32.mxu0 0.0
  %116 = vmatmul.mubr.f32.gmra.mrb[0].mxu0 %v44
  %v117 = vpop.f32.mrb[0].mxu0
  %v118 = vadd.f32 %v37, %v117
  %v119 = vpop.f32.mrb[0].mxu0
  %120 = vdwg.mxu0
  %v121 = vmul.f32 %v113, %v113
  %v122 = vmul.f32 %v118, %v118
  %v123 = vmul.f32 %v113, %v121
  %v124 = vmul.f32 %v118, %v122
  %v125 = vmul.f32 %v123, 0.044715
  %v126 = vmul.f32 %v124, 0.044715
  %v127 = vadd.f32 %v113, %v125
  %v128 = vadd.f32 %v118, %v126
  %v129 = vmul.f32 %v127, 0.7978846
  %v130 = vmul.f32 %v128, 0.7978846
  %v131 = vtanh.pop %v129
  %v132 = vtanh.pop %v130
  %v133 = vadd.f32 %v131, 1.0
  %v134 = vadd.f32 %v132, 1.0
  %v135 = vmul.f32 %v133, 0.5
  %v136 = vmul.f32 %v134, 0.5
  %v137 = vmul.f32 %v113, %v135
  %v138 = vmul.f32 %v118, %v136
  %v139 = vld [vmem:[%s3] sm:$0xff]
  %v140 = vld [vmem:[%s3 + $0x8] sm:$0xff]
  %v141 = vld [vmem:[%s3 + $0x10] sm:$0xff]
  %v142 = vld [vmem:[%s3 + $0x18] sm:$0xff]
  %v143 = vld [vmem:[%s3 + $0x20] sm:$0xff]
  %v144 = vld [vmem:[%s3 + $0x28] sm:$0xff]
  %v145 = vld [vmem:[%s3 + $0x30] sm:$0xff]
  %v146 = vld [vmem:[%s3 + $0x38] sm:$0xff]
  %v147 = vld [vmem:[%s4] sm:$0x1]
  %v149 = vlaneseq
  %v150 = vshrl.u32 %v149, 7
  %v151 = vsub.s32 0, %v150
  %v152 = vrot.slane %v147, %v151
  %vm154 = vcmask 523264
  %v156 = vsel %vm154, %v137, 0
  %v159 = vsel %vm154, %v138, 0
  %161 = vmatprep.subr.mxu0 0.0
  %162 = vmatpush1.msra.mxu0 %v139
  %163 = vmatprep.subr.mxu0 0.0
  %164 = vmatpush1.msra.mxu0 %v140
  %165 = vmatprep.subr.mxu0 0.0
  %166 = vmatpush1.msra.mxu0 %v141
  %167 = vmatprep.subr.mxu0 0.0
  %168 = vmatpush1.msra.mxu0 %v142
  %169 = vmatprep.subr.mxu0 0.0
  %170 = vmatpush1.msra.mxu0 %v143
  %171 = vmatprep.subr.mxu0 0.0
  %172 = vmatpush1.msra.mxu0 %v144
  %173 = vmatprep.subr.mxu0 0.0
  %174 = vmatpush1.msra.mxu0 %v145
  %175 = vmatprep.subr.mxu0 0.0
  %176 = vmatpush1.msra.mxu0 %v146
  %177 = vmatprep.subr.mxu0 0.0
  %178 = vmatpush1.msra.mxu0 0.0
  %179 = vmatprep.subr.mxu0 0.0
  %180 = vmatpush1.msra.mxu0 0.0
  %181 = vmatprep.subr.mxu0 0.0
  %182 = vmatpush1.msra.mxu0 0.0
  %183 = vmatprep.subr.mxu0 0.0
  %184 = vmatpush1.msra.mxu0 0.0
  %185 = vmatprep.subr.mxu0 0.0
  %186 = vmatpush1.msra.mxu0 0.0
  %187 = vmatprep.subr.mxu0 0.0
  %188 = vmatpush1.msra.mxu0 0.0
  %189 = vmatprep.subr.mxu0 0.0
  %190 = vmatpush1.msra.mxu0 0.0
  %191 = vmatprep.subr.mxu0 0.0
  %192 = vmatpush1.msra.mxu0 0.0
  %193 = vmatprep.subr.mxu0 0.0
  %194 = vmatpush1.msra.mxu0 0.0
  %195 = vmatprep.subr.mxu0 0.0
  %196 = vmatpush1.msra.mxu0 0.0
  %197 = vmatprep.subr.mxu0 0.0
  %198 = vmatpush1.msra.mxu0 0.0
  %199 = vmatprep.subr.mxu0 0.0
  %200 = vmatpush1.msra.mxu0 0.0
  %201 = vmatprep.subr.mxu0 0.0
  %202 = vmatpush1.msra.mxu0 0.0
  %203 = vmatprep.subr.mxu0 0.0
  %204 = vmatpush1.msra.mxu0 0.0
  %205 = vmatprep.subr.mxu0 0.0
  %206 = vmatpush1.msra.mxu0 0.0
  %207 = vmatprep.subr.mxu0 0.0
  %208 = vmatpush1.msra.mxu0 0.0
  %209 = vmatprep.subr.mxu0 0.0
  %210 = vmatpush1.msra.mxu0 0.0
  %211 = vmatprep.subr.mxu0 0.0
  %212 = vmatpush1.msra.mxu0 0.0
  %213 = vmatprep.subr.mxu0 0.0
  %214 = vmatpush1.msra.mxu0 0.0
  %215 = vmatprep.subr.mxu0 0.0
  %216 = vmatpush1.msra.mxu0 0.0
  %217 = vmatprep.subr.mxu0 0.0
  %218 = vmatpush1.msra.mxu0 0.0
  %219 = vmatprep.subr.mxu0 0.0
  %220 = vmatpush1.msra.mxu0 0.0
  %221 = vmatprep.subr.mxu0 0.0
  %222 = vmatpush1.msra.mxu0 0.0
  %223 = vmatprep.subr.mxu0 0.0
  %224 = vmatpush1.msra.mxu0 0.0
  %225 = vmatprep.mubr.f32.mxu0 0.0
  %226 = vmatmul.mubr.f32.gmra.mrb[0].mxu0 %v156
  %v227 = vpop.f32.mrb[0].mxu0
  %v228 = vadd.f32 %v152, %v227
  %v229 = vpop.f32.mrb[0].mxu0
  %230 = vmatprep.mubr.f32.mxu0 0.0
  %231 = vmatmul.mubr.f32.gmra.mrb[0].mxu0 %v159
  %v232 = vpop.f32.mrb[0].mxu0
  %v233 = vadd.f32 %v152, %v232
  %v234 = vpop.f32.mrb[0].mxu0
  %235 = vdwg.mxu0
  %v236 = vadd.f32 %v228, %v26
  %v237 = vadd.f32 %v233, %v27
  %v238 = vsel %vm39, %v236, 0.0
  %239 = vadd.xlane.f32.xlu0 %v238
  %v240 = vpop.xlane.xlu0 %239
  %v241 = vsel %vm39, %v237, 0.0
  %242 = vadd.xlane.f32.xlu0 %v241
  %v243 = vpop.xlane.xlu0 %242
  %v244 = vrcp.pop 32.0
  %v245 = vmul.f32 %v240, %v244
  %v246 = vmul.f32 %v243, %v244
  %v247 = vsub.f32 %v236, %v245
  %v248 = vsub.f32 %v237, %v246
  %v249 = vmul.f32 %v247, %v247
  %v250 = vmul.f32 %v248, %v248
  %v251 = vsel %vm39, %v249, 0.0
  %252 = vadd.xlane.f32.xlu0 %v251
  %v253 = vpop.xlane.xlu0 %252
  %v254 = vsel %vm39, %v250, 0.0
  %255 = vadd.xlane.f32.xlu0 %v254
  %v256 = vpop.xlane.xlu0 %255
  %v257 = vmul.f32 %v253, %v244
  %v258 = vmul.f32 %v256, %v244
  %v259 = vadd.f32 %v257, 1e-12
  %v260 = vadd.f32 %v258, 1e-12
  %v261 = vrsqrt.pop %v259
  %v262 = vrsqrt.pop %v260
  %v263 = vmul.f32 %v247, %v261
  %v264 = vmul.f32 %v248, %v262
  %v265 = vld [vmem:[%s5] sm:$0x1]
  %v267 = vlaneseq
  %v268 = vshrl.u32 %v267, 7
  %v269 = vsub.s32 0, %v268
  %v270 = vrot.slane %v265, %v269
  %v272 = vmul.f32 %v263, %v270
  %v273 = vmul.f32 %v264, %v270
  %v274 = vld [vmem:[%s6] sm:$0x1]
  %v276 = vlaneseq
  %v277 = vshrl.u32 %v276, 7
  %v278 = vsub.s32 0, %v277
  %v279 = vrot.slane %v274, %v278
  %v281 = vadd.f32 %v272, %v279
  %v282 = vadd.f32 %v273, %v279
  %283 = vst.msk [vmem:[%s7] sm:$0xff] %vm39, %v281
  %284 = vst.msk [vmem:[%s7 + $0x8] sm:$0xff] %vm39, %v282
  // Predicated region
  $region30: #{forward.7} parent=0 // pred_check
    _
  $region31: #{forward.7} parent=0 // pred_check_branch
    %286 = sbr.rel (0) target = $region33
  $region32: #{forward.7} parent=0 // pred_region
    _
  $region33: #{forward.7} parent=0 // pred_fallthru
    _
  // Predicated region
  $region34: #{forward.7} parent=0 // pred_check
    _
  $region35: #{forward.7} parent=0 // pred_check_branch
    %288 = sbr.rel (0) target = $region37
  $region36: #{forward.7} parent=0 // pred_region
    _
  $region37: #{forward.7} parent=0 // pred_fallthru
    _

// kernel: forward.9
$region0: #{forward.9}
  #allocation0 [shape = 'u32[]', space=smem, size = 0x4, offset = 0x4, fixed_abs, tag = 'smem constant byte address 0x4 - core index']
  #allocation1 [shape = 'u32[144,128]{1,0:T(1,128)}', space=vmem, size = 0x12000, scoped, tag = 'internal scratch']
  %s0 = inlined_call_operand.vmem [shape: f32[16,32], index: 0, kind: input, shape index: {}]
  %s1 = inlined_call_operand.vmem [shape: f32[32,64], index: 1, kind: input, shape index: {}]
  %s2 = inlined_call_operand.vmem [shape: f32[1,64], index: 2, kind: input, shape index: {}]
  %s3 = inlined_call_operand.vmem [shape: f32[64,32], index: 3, kind: input, shape index: {}]
  %s4 = inlined_call_operand.vmem [shape: f32[1,32], index: 4, kind: input, shape index: {}]
  %s5 = inlined_call_operand.vmem [shape: f32[1,32], index: 5, kind: input, shape index: {}]
  %s6 = inlined_call_operand.vmem [shape: f32[1,32], index: 6, kind: input, shape index: {}]
  %s7 = inlined_call_operand.vmem [shape: f32[32,3], index: 7, kind: input, shape index: {}]
  %s8 = inlined_call_operand.vmem [shape: f32[1,3], index: 8, kind: input, shape index: {}]
  %s9 = inlined_call_operand.vmem [shape: f32[16,3], index: 9, kind: output, shape index: {}]
  %s10 = sld [smem:[#allocation0]]
  $region46: #{forward.9} parent=0
    _
  %s12 = ssub.s32 1, %s10
  %s13 = scalar_select 0, %s12, %s10
  // Predicated region
  $region2: #{forward.9} parent=0 // pred_check
    _
  $region3: #{forward.9} parent=0 // pred_check_branch
    %15 = sbr.rel (0) target = $region5
  $region4: #{forward.9} parent=0 // pred_region
    _
  $region5: #{forward.9} parent=0 // pred_fallthru
    _
  // Predicated region
  $region6: #{forward.9} parent=0 // pred_check
    _
  $region7: #{forward.9} parent=0 // pred_check_branch
    %17 = sbr.rel (0) target = $region9
  $region8: #{forward.9} parent=0 // pred_region
    _
  $region9: #{forward.9} parent=0 // pred_fallthru
    _
  // Predicated region
  $region10: #{forward.9} parent=0 // pred_check
    _
  $region11: #{forward.9} parent=0 // pred_check_branch
    %19 = sbr.rel (0) target = $region13
  $region12: #{forward.9} parent=0 // pred_region
    _
  $region13: #{forward.9} parent=0 // pred_fallthru
    _
  // Predicated region
  $region14: #{forward.9} parent=0 // pred_check
    _
  $region15: #{forward.9} parent=0 // pred_check_branch
    %21 = sbr.rel (0) target = $region17
  $region16: #{forward.9} parent=0 // pred_region
    _
  $region17: #{forward.9} parent=0 // pred_fallthru
    _
  // Predicated region
  $region18: #{forward.9} parent=0 // pred_check
    _
  $region19: #{forward.9} parent=0 // pred_check_branch
    %23 = sbr.rel (0) target = $region21
  $region20: #{forward.9} parent=0 // pred_region
    _
  $region21: #{forward.9} parent=0 // pred_fallthru
    _
  // Predicated region
  $region22: #{forward.9} parent=0 // pred_check
    _
  $region23: #{forward.9} parent=0 // pred_check_branch
    %25 = sbr.rel (0) target = $region25
  $region24: #{forward.9} parent=0 // pred_region
    _
  $region25: #{forward.9} parent=0 // pred_fallthru
    _
  // Predicated region
  $region26: #{forward.9} parent=0 // pred_check
    _
  $region27: #{forward.9} parent=0 // pred_check_branch
    %27 = sbr.rel (0) target = $region29
  $region28: #{forward.9} parent=0 // pred_region
    _
  $region29: #{forward.9} parent=0 // pred_fallthru
    _
  // Predicated region
  $region30: #{forward.9} parent=0 // pred_check
    _
  $region31: #{forward.9} parent=0 // pred_check_branch
    %29 = sbr.rel (0) target = $region33
  $region32: #{forward.9} parent=0 // pred_region
    _
  $region33: #{forward.9} parent=0 // pred_fallthru
    _
  // Predicated region
  $region34: #{forward.9} parent=0 // pred_check
    _
  $region35: #{forward.9} parent=0 // pred_check_branch
    %31 = sbr.rel (0) target = $region37
  $region36: #{forward.9} parent=0 // pred_region
    _
  $region37: #{forward.9} parent=0 // pred_fallthru
    _
  %v32 = vld [vmem:[%s0] sm:$0xff]
  %v33 = vld [vmem:[%s0 + $0x8] sm:$0xff]
  %v34 = vld [vmem:[%s1] sm:$0xff]
  %v35 = vld [vmem:[%s1 + $0x8] sm:$0xff]
  %v36 = vld [vmem:[%s1 + $0x10] sm:$0xff]
  %v37 = vld [vmem:[%s1 + $0x18] sm:$0xff]
  %v38 = vld [vmem:[%s2] sm:$0x1]
  %v40 = vlaneseq
  %v41 = vshrl.u32 %v40, 7
  %v42 = vsub.s32 0, %v41
  %v43 = vrot.slane %v38, %v42
  %vm45 = vcmask 261120
  %v47 = vsel %vm45, %v32, 0
  %v50 = vsel %vm45, %v33, 0
  %52 = vmatprep.subr.mxu0 0.0
  %53 = vmatpush1.msra.mxu0 %v34
  %54 = vmatprep.subr.mxu0 0.0
  %55 = vmatpush1.msra.mxu0 %v35
  %56 = vmatprep.subr.mxu0 0.0
  %57 = vmatpush1.msra.mxu0 %v36
  %58 = vmatprep.subr.mxu0 0.0
  %59 = vmatpush1.msra.mxu0 %v37
  %60 = vmatprep.subr.mxu0 0.0
  %61 = vmatpush1.msra.mxu0 0.0
  %62 = vmatprep.subr.mxu0 0.0
  %63 = vmatpush1.msra.mxu0 0.0
  %64 = vmatprep.subr.mxu0 0.0
  %65 = vmatpush1.msra.mxu0 0.0
  %66 = vmatprep.subr.mxu0 0.0
  %67 = vmatpush1.msra.mxu0 0.0
  %68 = vmatprep.subr.mxu0 0.0
  %69 = vmatpush1.msra.mxu0 0.0
  %70 = vmatprep.subr.mxu0 0.0
  %71 = vmatpush1.msra.mxu0 0.0
  %72 = vmatprep.subr.mxu0 0.0
  %73 = vmatpush1.msra.mxu0 0.0
  %74 = vmatprep.subr.mxu0 0.0
  %75 = vmatpush1.msra.mxu0 0.0
  %76 = vmatprep.subr.mxu0 0.0
  %77 = vmatpush1.msra.mxu0 0.0
  %78 = vmatprep.subr.mxu0 0.0
  %79 = vmatpush1.msra.mxu0 0.0
  %80 = vmatprep.subr.mxu0 0.0
  %81 = vmatpush1.msra.mxu0 0.0
  %82 = vmatprep.subr.mxu0 0.0
  %83 = vmatpush1.msra.mxu0 0.0
  %84 = vmatprep.subr.mxu0 0.0
  %85 = vmatpush1.msra.mxu0 0.0
  %86 = vmatprep.subr.mxu0 0.0
  %87 = vmatpush1.msra.mxu0 0.0
  %88 = vmatprep.subr.mxu0 0.0
  %89 = vmatpush1.msra.mxu0 0.0
  %90 = vmatprep.subr.mxu0 0.0
  %91 = vmatpush1.msra.mxu0 0.0
  %92 = vmatprep.subr.mxu0 0.0
  %93 = vmatpush1.msra.mxu0 0.0
  %94 = vmatprep.subr.mxu0 0.0
  %95 = vmatpush1.msra.mxu0 0.0
  %96 = vmatprep.subr.mxu0 0.0
  %97 = vmatpush1.msra.mxu0 0.0
  %98 = vmatprep.subr.mxu0 0.0
  %99 = vmatpush1.msra.mxu0 0.0
  %100 = vmatprep.subr.mxu0 0.0
  %101 = vmatpush1.msra.mxu0 0.0
  %102 = vmatprep.subr.mxu0 0.0
  %103 = vmatpush1.msra.mxu0 0.0
  %104 = vmatprep.subr.mxu0 0.0
  %105 = vmatpush1.msra.mxu0 0.0
  %106 = vmatprep.subr.mxu0 0.0
  %107 = vmatpush1.msra.mxu0 0.0
  %108 = vmatprep.subr.mxu0 0.0
  %109 = vmatpush1.msra.mxu0 0.0
  %110 = vmatprep.subr.mxu0 0.0
  %111 = vmatpush1.msra.mxu0 0.0
  %112 = vmatprep.subr.mxu0 0.0
  %113 = vmatpush1.msra.mxu0 0.0
  %114 = vmatprep.subr.mxu0 0.0
  %115 = vmatpush1.msra.mxu0 0.0
  %116 = vmatprep.mubr.f32.mxu0 0.0
  %117 = vmatmul.mubr.f32.gmra.mrb[0].mxu0 %v47
  %v118 = vpop.f32.mrb[0].mxu0
  %v119 = vadd.f32 %v43, %v118
  %v120 = vpop.f32.mrb[0].mxu0
  %121 = vmatprep.mubr.f32.mxu0 0.0
  %122 = vmatmul.mubr.f32.gmra.mrb[0].mxu0 %v50
  %v123 = vpop.f32.mrb[0].mxu0
  %v124 = vadd.f32 %v43, %v123
  %v125 = vpop.f32.mrb[0].mxu0
  %126 = vdwg.mxu0
  %v127 = vmul.f32 %v119, %v119
  %v128 = vmul.f32 %v124, %v124
  %v129 = vmul.f32 %v119, %v127
  %v130 = vmul.f32 %v124, %v128
  %v131 = vmul.f32 %v129, 0.044715
  %v132 = vmul.f32 %v130, 0.044715
  %v133 = vadd.f32 %v119, %v131
  %v134 = vadd.f32 %v124, %v132
  %v135 = vmul.f32 %v133, 0.7978846
  %v136 = vmul.f32 %v134, 0.7978846
  %v137 = vtanh.pop %v135
  %v138 = vtanh.pop %v136
  %v139 = vadd.f32 %v137, 1.0
  %v140 = vadd.f32 %v138, 1.0
  %v141 = vmul.f32 %v139, 0.5
  %v142 = vmul.f32 %v140, 0.5
  %v143 = vmul.f32 %v119, %v141
  %v144 = vmul.f32 %v124, %v142
  %v145 = vld [vmem:[%s3] sm:$0xff]
  %v146 = vld [vmem:[%s3 + $0x8] sm:$0xff]
  %v147 = vld [vmem:[%s3 + $0x10] sm:$0xff]
  %v148 = vld [vmem:[%s3 + $0x18] sm:$0xff]
  %v149 = vld [vmem:[%s3 + $0x20] sm:$0xff]
  %v150 = vld [vmem:[%s3 + $0x28] sm:$0xff]
  %v151 = vld [vmem:[%s3 + $0x30] sm:$0xff]
  %v152 = vld [vmem:[%s3 + $0x38] sm:$0xff]
  %v153 = vld [vmem:[%s4] sm:$0x1]
  %v155 = vlaneseq
  %v156 = vshrl.u32 %v155, 7
  %v157 = vsub.s32 0, %v156
  %v158 = vrot.slane %v153, %v157
  %vm160 = vcmask 523264
  %v162 = vsel %vm160, %v143, 0
  %v165 = vsel %vm160, %v144, 0
  %167 = vmatprep.subr.mxu0 0.0
  %168 = vmatpush1.msra.mxu0 %v145
  %169 = vmatprep.subr.mxu0 0.0
  %170 = vmatpush1.msra.mxu0 %v146
  %171 = vmatprep.subr.mxu0 0.0
  %172 = vmatpush1.msra.mxu0 %v147
  %173 = vmatprep.subr.mxu0 0.0
  %174 = vmatpush1.msra.mxu0 %v148
  %175 = vmatprep.subr.mxu0 0.0
  %176 = vmatpush1.msra.mxu0 %v149
  %177 = vmatprep.subr.mxu0 0.0
  %178 = vmatpush1.msra.mxu0 %v150
  %179 = vmatprep.subr.mxu0 0.0
  %180 = vmatpush1.msra.mxu0 %v151
  %181 = vmatprep.subr.mxu0 0.0
  %182 = vmatpush1.msra.mxu0 %v152
  %183 = vmatprep.subr.mxu0 0.0
  %184 = vmatpush1.msra.mxu0 0.0
  %185 = vmatprep.subr.mxu0 0.0
  %186 = vmatpush1.msra.mxu0 0.0
  %187 = vmatprep.subr.mxu0 0.0
  %188 = vmatpush1.msra.mxu0 0.0
  %189 = vmatprep.subr.mxu0 0.0
  %190 = vmatpush1.msra.mxu0 0.0
  %191 = vmatprep.subr.mxu0 0.0
  %192 = vmatpush1.msra.mxu0 0.0
  %193 = vmatprep.subr.mxu0 0.0
  %194 = vmatpush1.msra.mxu0 0.0
  %195 = vmatprep.subr.mxu0 0.0
  %196 = vmatpush1.msra.mxu0 0.0
  %197 = vmatprep.subr.mxu0 0.0
  %198 = vmatpush1.msra.mxu0 0.0
  %199 = vmatprep.subr.mxu0 0.0
  %200 = vmatpush1.msra.mxu0 0.0
  %201 = vmatprep.subr.mxu0 0.0
  %202 = vmatpush1.msra.mxu0 0.0
  %203 = vmatprep.subr.mxu0 0.0
  %204 = vmatpush1.msra.mxu0 0.0
  %205 = vmatprep.subr.mxu0 0.0
  %206 = vmatpush1.msra.mxu0 0.0
  %207 = vmatprep.subr.mxu0 0.0
  %208 = vmatpush1.msra.mxu0 0.0
  %209 = vmatprep.subr.mxu0 0.0
  %210 = vmatpush1.msra.mxu0 0.0
  %211 = vmatprep.subr.mxu0 0.0
  %212 = vmatpush1.msra.mxu0 0.0
  %213 = vmatprep.subr.mxu0 0.0
  %214 = vmatpush1.msra.mxu0 0.0
  %215 = vmatprep.subr.mxu0 0.0
  %216 = vmatpush1.msra.mxu0 0.0
  %217 = vmatprep.subr.mxu0 0.0
  %218 = vmatpush1.msra.mxu0 0.0
  %219 = vmatprep.subr.mxu0 0.0
  %220 = vmatpush1.msra.mxu0 0.0
  %221 = vmatprep.subr.mxu0 0.0
  %222 = vmatpush1.msra.mxu0 0.0
  %223 = vmatprep.subr.mxu0 0.0
  %224 = vmatpush1.msra.mxu0 0.0
  %225 = vmatprep.subr.mxu0 0.0
  %226 = vmatpush1.msra.mxu0 0.0
  %227 = vmatprep.subr.mxu0 0.0
  %228 = vmatpush1.msra.mxu0 0.0
  %229 = vmatprep.subr.mxu0 0.0
  %230 = vmatpush1.msra.mxu0 0.0
  %231 = vmatprep.mubr.f32.mxu0 0.0
  %232 = vmatmul.mubr.f32.gmra.mrb[0].mxu0 %v162
  %v233 = vpop.f32.mrb[0].mxu0
  %v234 = vadd.f32 %v158, %v233
  %v235 = vpop.f32.mrb[0].mxu0
  %236 = vmatprep.mubr.f32.mxu0 0.0
  %237 = vmatmul.mubr.f32.gmra.mrb[0].mxu0 %v165
  %v238 = vpop.f32.mrb[0].mxu0
  %v239 = vadd.f32 %v158, %v238
  %v240 = vpop.f32.mrb[0].mxu0
  %241 = vdwg.mxu0
  %v242 = vadd.f32 %v234, %v32
  %v243 = vadd.f32 %v239, %v33
  %v244 = vsel %vm45, %v242, 0.0
  %245 = vadd.xlane.f32.xlu0 %v244
  %v246 = vpop.xlane.xlu0 %245
  %v247 = vsel %vm45, %v243, 0.0
  %248 = vadd.xlane.f32.xlu0 %v247
  %v249 = vpop.xlane.xlu0 %248
  %v250 = vrcp.pop 32.0
  %v251 = vmul.f32 %v246, %v250
  %v252 = vmul.f32 %v249, %v250
  %v253 = vsub.f32 %v242, %v251
  %v254 = vsub.f32 %v243, %v252
  %v255 = vmul.f32 %v253, %v253
  %v256 = vmul.f32 %v254, %v254
  %v257 = vsel %vm45, %v255, 0.0
  %258 = vadd.xlane.f32.xlu0 %v257
  %v259 = vpop.xlane.xlu0 %258
  %v260 = vsel %vm45, %v256, 0.0
  %261 = vadd.xlane.f32.xlu0 %v260
  %v262 = vpop.xlane.xlu0 %261
  %v263 = vmul.f32 %v259, %v250
  %v264 = vmul.f32 %v262, %v250
  %v265 = vadd.f32 %v263, 1e-12
  %v266 = vadd.f32 %v264, 1e-12
  %v267 = vrsqrt.pop %v265
  %v268 = vrsqrt.pop %v266
  %v269 = vmul.f32 %v253, %v267
  %v270 = vmul.f32 %v254, %v268
  %v271 = vld [vmem:[%s5] sm:$0x1]
  %v273 = vlaneseq
  %v274 = vshrl.u32 %v273, 7
  %v275 = vsub.s32 0, %v274
  %v276 = vrot.slane %v271, %v275
  %v278 = vmul.f32 %v269, %v276
  %v279 = vmul.f32 %v270, %v276
  %v280 = vld [vmem:[%s6] sm:$0x1]
  %v282 = vlaneseq
  %v283 = vshrl.u32 %v282, 7
  %v284 = vsub.s32 0, %v283
  %v285 = vrot.slane %v280, %v284
  %v287 = vadd.f32 %v278, %v285
  %v288 = vadd.f32 %v279, %v285
  %v289 = vld [vmem:[%s7] sm:$0xff]
  %v290 = vld [vmem:[%s7 + $0x8] sm:$0xff]
  %v291 = vld [vmem:[%s7 + $0x10] sm:$0xff]
  %v292 = vld [vmem:[%s7 + $0x18] sm:$0xff]
  %v293 = vld [vmem:[%s8] sm:$0x1]
  %v295 = vlaneseq
  %v296 = vshrl.u32 %v295, 7
  %v297 = vsub.s32 0, %v296
  %v298 = vrot.slane %v293, %v297
  %v301 = vsel %vm45, %v287, 0
  %v304 = vsel %vm45, %v288, 0
  %306 = vmatprep.subr.mxu0 0.0
  %307 = vmatpush1.msra.mxu0 %v289
  %308 = vmatprep.subr.mxu0 0.0
  %309 = vmatpush1.msra.mxu0 %v290
  %310 = vmatprep.subr.mxu0 0.0
  %311 = vmatpush1.msra.mxu0 %v291
  %312 = vmatprep.subr.mxu0 0.0
  %313 = vmatpush1.msra.mxu0 %v292
  %314 = vmatprep.subr.mxu0 0.0
  %315 = vmatpush1.msra.mxu0 0.0
  %316 = vmatprep.subr.mxu0 0.0
  %317 = vmatpush1.msra.mxu0 0.0
  %318 = vmatprep.subr.mxu0 0.0
  %319 = vmatpush1.msra.mxu0 0.0
  %320 = vmatprep.subr.mxu0 0.0
  %321 = vmatpush1.msra.mxu0 0.0
  %322 = vmatprep.subr.mxu0 0.0
  %323 = vmatpush1.msra.mxu0 0.0
  %324 = vmatprep.subr.mxu0 0.0
  %325 = vmatpush1.msra.mxu0 0.0
  %326 = vmatprep.subr.mxu0 0.0
  %327 = vmatpush1.msra.mxu0 0.0
  %328 = vmatprep.subr.mxu0 0.0
  %329 = vmatpush1.msra.mxu0 0.0
  %330 = vmatprep.subr.mxu0 0.0
  %331 = vmatpush1.msra.mxu0 0.0
  %332 = vmatprep.subr.mxu0 0.0
  %333 = vmatpush1.msra.mxu0 0.0
  %334 = vmatprep.subr.mxu0 0.0
  %335 = vmatpush1.msra.mxu0 0.0
  %336 = vmatprep.subr.mxu0 0.0
  %337 = vmatpush1.msra.mxu0 0.0
  %338 = vmatprep.subr.mxu0 0.0
  %339 = vmatpush1.msra.mxu0 0.0
  %340 = vmatprep.subr.mxu0 0.0
  %341 = vmatpush1.msra.mxu0 0.0
  %342 = vmatprep.subr.mxu0 0.0
  %343 = vmatpush1.msra.mxu0 0.0
  %344 = vmatprep.subr.mxu0 0.0
  %345 = vmatpush1.msra.mxu0 0.0
  %346 = vmatprep.subr.mxu0 0.0
  %347 = vmatpush1.msra.mxu0 0.0
  %348 = vmatprep.subr.mxu0 0.0
  %349 = vmatpush1.msra.mxu0 0.0
  %350 = vmatprep.subr.mxu0 0.0
  %351 = vmatpush1.msra.mxu0 0.0
  %352 = vmatprep.subr.mxu0 0.0
  %353 = vmatpush1.msra.mxu0 0.0
  %354 = vmatprep.subr.mxu0 0.0
  %355 = vmatpush1.msra.mxu0 0.0
  %356 = vmatprep.subr.mxu0 0.0
  %357 = vmatpush1.msra.mxu0 0.0
  %358 = vmatprep.subr.mxu0 0.0
  %359 = vmatpush1.msra.mxu0 0.0
  %360 = vmatprep.subr.mxu0 0.0
  %361 = vmatpush1.msra.mxu0 0.0
  %362 = vmatprep.subr.mxu0 0.0
  %363 = vmatpush1.msra.mxu0 0.0
  %364 = vmatprep.subr.mxu0 0.0
  %365 = vmatpush1.msra.mxu0 0.0
  %366 = vmatprep.subr.mxu0 0.0
  %367 = vmatpush1.msra.mxu0 0.0
  %368 = vmatprep.subr.mxu0 0.0
  %369 = vmatpush1.msra.mxu0 0.0
  %370 = vmatprep.mubr.f32.mxu0 0.0
  %371 = vmatmul.mubr.f32.gmra.mrb[0].mxu0 %v301
  %v372 = vpop.f32.mrb[0].mxu0
  %v373 = vadd.f32 %v298, %v372
  %v374 = vpop.f32.mrb[0].mxu0
  %375 = vmatprep.mubr.f32.mxu0 0.0
  %376 = vmatmul.mubr.f32.gmra.mrb[0].mxu0 %v304
  %v377 = vpop.f32.mrb[0].mxu0
  %v378 = vadd.f32 %v298, %v377
  %v379 = vpop.f32.mrb[0].mxu0
  %380 = vdwg.mxu0
  %vm381 = vcmask 23552
  %382 = vst.msk [vmem:[%s9] sm:$0xff] %vm381, %v373
  %383 = vst.msk [vmem:[%s9 + $0x8] sm:$0xff] %vm381, %v378
  // Predicated region
  $region38: #{forward.9} parent=0 // pred_check
    _
  $region39: #{forward.9} parent=0 // pred_check_branch
    %385 = sbr.rel (0) target = $region41
  $region40: #{forward.9} parent=0 // pred_region
    _
  $region41: #{forward.9} parent=0 // pred_fallthru
    _
  // Predicated region
  $region42: #{forward.9} parent=0 // pred_check
    _
  $region43: #{forward.9} parent=0 // pred_check_branch
    %387 = sbr.rel (0) target = $region45
  $region44: #{forward.9} parent=0 // pred_region
    _
  $region45: #{forward.9} parent=0 // pred_fallthru
    _

// kernel: forward.6
$region0: #{forward.6}
  #allocation0 [shape = 'u32[]', space=smem, size = 0x4, offset = 0x4, fixed_abs, tag = 'smem constant byte address 0x4 - core index']
  #allocation1 [shape = 'u32[144,128]{1,0:T(1,128)}', space=vmem, size = 0x12000, scoped, tag = 'internal scratch']
  #allocation2 [shape = 'f32[8,96]{1,0:T(8,128)}', space=vmem, size = 0x1000, scoped, tag = 'scratch operand']
  %s0 = inlined_call_operand.vmem [shape: f32[16,32], index: 0, kind: input, shape index: {}]
  %s1 = inlined_call_operand.vmem [shape: f32[32,96], index: 1, kind: input, shape index: {}]
  %s2 = inlined_call_operand.vmem [shape: f32[1,96], index: 2, kind: input, shape index: {}]
  %s3 = inlined_call_operand.vmem [shape: f32[2,1,8], index: 3, kind: input, shape index: {}]
  %s4 = inlined_call_operand.vmem [shape: f32[32,32], index: 4, kind: input, shape index: {}]
  %s5 = inlined_call_operand.vmem [shape: f32[1,32], index: 5, kind: input, shape index: {}]
  %s6 = inlined_call_operand.vmem [shape: f32[1,32], index: 6, kind: input, shape index: {}]
  %s7 = inlined_call_operand.vmem [shape: f32[1,32], index: 7, kind: input, shape index: {}]
  %s8 = inlined_call_operand.vmem [shape: f32[16,32], index: 8, kind: output, shape index: {}]
  %s9 = sld [smem:[#allocation0]]
  $region65: #{forward.6} parent=0
    _
  %s11 = ssub.s32 1, %s9
  %s12 = scalar_select 0, %s11, %s9
  loop: start=0, step=1, limit=4
  $region2: #{forward.6} parent=0 // loop_pre_header
    _
  $region3: #{forward.6} parent=0 // loop_header
    %s14 = sphi 0, %s18
    %p15 = scmp.ge.s32.totalorder %s14, 4
    %s24 = sphi 0, %s26
    %s27 = sphi 0, %s24
    %s28 = sphi 0, %s27
    %s44 = sphi 0, %s28
    %s48 = sphi 0, %s48
    %s50 = sphi 0, %s48
    %s51 = sphi 0, %s50
    %s65 = sphi 0, %s51
    %s69 = sphi 0, %s69
    %s71 = sphi 0, %s69
    %s72 = sphi 0, %s71
    %s86 = sphi 0, %s72
    %s92 = sphi 0, %s94
    %s95 = sphi 0, %s92
    %s96 = sphi 0, %s95
    %s112 = sphi 0, %s96
    %s116 = sphi 0, %s116
    %s118 = sphi 0, %s116
    %s119 = sphi 0, %s118
    %s133 = sphi 0, %s119
    %s137 = sphi 0, %s137
    %s139 = sphi 0, %s137
    %s140 = sphi 0, %s139
    %s154 = sphi 0, %s140
    %s158 = sphi 0, %s158
    %s160 = sphi 0, %s158
    %s161 = sphi 0, %s160
    %s175 = sphi 0, %s161
    %s179 = sphi 0, %s179
    %s181 = sphi 0, %s179
    %s182 = sphi 0, %s181
    %s196 = sphi 0, %s182
    %s202 = sphi 0, %s204
    %s205 = sphi 0, %s202
    %s206 = sphi 0, %s205
    %s222 = sphi 0, %s206
  $region4: #{forward.6} parent=0 // loop_header_branch
    %17 = sbr.rel (%p15) target = $region8
  $region5: #{forward.6} parent=0 // loop_body
    %s19 = ssub.s32 %s14, 1
    %s20 = ssub.s32 %s14, 2
    %s21 = sadd.s32 %s14, 1
    %s22 = ssub.s32 %s14, %s21
    %p23 = scmp.eq.s32.totalorder %s22, 0
    %s25 = sadd.s32 %s24, 1
    %s26 = scalar_select %p23, %s24, %s25
    %p29 = pneg %p23
    %p30 = scmp.eq.s32.totalorder %s14, 1
    %p31 = por %p29, %p30
    %p32 = scmp.ne.s32.totalorder %s24, %s27
    %p33 = scmp.eq.s32.totalorder %s14, 0
    %p34 = por %p32, %p33
    %p35 = scmp.ne.s32.totalorder %s24, %s27
    %p36 = scmp.eq.s32.totalorder %s19, 1
    %p37 = por %p35, %p36
    %p38 = scmp.ne.s32.totalorder %s27, %s28
    %p39 = scmp.eq.s32.totalorder %s19, 0
    %p40 = por %p38, %p39
    %p41 = scmp.ne.s32.totalorder %s27, %s28
    %p42 = scmp.eq.s32.totalorder %s20, 1
    %p43 = por %p41, %p42
    %p45 = scmp.ne.s32.totalorder %s28, %s44
    %p46 = scmp.eq.s32.totalorder %s20, 0
    %p47 = por %p45, %p46
    %s49 = sadd.s32 %s48, 1
    %p52 = scmp.eq.s32.totalorder %s14, 1
    %p53 = scmp.ne.s32.totalorder %s48, %s50
    %p54 = scmp.eq.s32.totalorder %s14, 0
    %p55 = por %p53, %p54
    %p56 = scmp.ne.s32.totalorder %s48, %s50
    %p57 = scmp.eq.s32.totalorder %s19, 1
    %p58 = por %p56, %p57
    %p59 = scmp.ne.s32.totalorder %s50, %s51
    %p60 = scmp.eq.s32.totalorder %s19, 0
    %p61 = por %p59, %p60
    %p62 = scmp.ne.s32.totalorder %s50, %s51
    %p63 = scmp.eq.s32.totalorder %s20, 1
    %p64 = por %p62, %p63
    %p66 = scmp.ne.s32.totalorder %s51, %s65
    %p67 = scmp.eq.s32.totalorder %s20, 0
    %p68 = por %p66, %p67
    %s70 = sadd.s32 %s69, 1
    %p73 = scmp.eq.s32.totalorder %s14, 1
    %p74 = scmp.ne.s32.totalorder %s69, %s71
    %p75 = scmp.eq.s32.totalorder %s14, 0
    %p76 = por %p74, %p75
    %p77 = scmp.ne.s32.totalorder %s69, %s71
    %p78 = scmp.eq.s32.totalorder %s19, 1
    %p79 = por %p77, %p78
    %p80 = scmp.ne.s32.totalorder %s71, %s72
    %p81 = scmp.eq.s32.totalorder %s19, 0
    %p82 = por %p80, %p81
    %p83 = scmp.ne.s32.totalorder %s71, %s72
    %p84 = scmp.eq.s32.totalorder %s20, 1
    %p85 = por %p83, %p84
    %p87 = scmp.ne.s32.totalorder %s72, %s86
    %p88 = scmp.eq.s32.totalorder %s20, 0
    %p89 = por %p87, %p88
    %s90 = ssub.s32 %s14, %s21
    %p91 = scmp.eq.s32.totalorder %s90, 0
    %s93 = sadd.s32 %s92, 1
    %s94 = scalar_select %p91, %s92, %s93
    %p97 = pneg %p91
    %p98 = scmp.eq.s32.totalorder %s14, 1
    %p99 = por %p97, %p98
    %p100 = scmp.ne.s32.totalorder %s92, %s95
    %p101 = scmp.eq.s32.totalorder %s14, 0
    %p102 = por %p100, %p101
    %p103 = scmp.ne.s32.totalorder %s92, %s95
    %p104 = scmp.eq.s32.totalorder %s19, 1
    %p105 = por %p103, %p104
    %p106 = scmp.ne.s32.totalorder %s95, %s96
    %p107 = scmp.eq.s32.totalorder %s19, 0
    %p108 = por %p106, %p107
    %p109 = scmp.ne.s32.totalorder %s95, %s96
    %p110 = scmp.eq.s32.totalorder %s20, 1
    %p111 = por %p109, %p110
    %p113 = scmp.ne.s32.totalorder %s96, %s112
    %p114 = scmp.eq.s32.totalorder %s20, 0
    %p115 = por %p113, %p114
    %s117 = sadd.s32 %s116, 1
    %p120 = scmp.eq.s32.totalorder %s14, 1
    %p121 = scmp.ne.s32.totalorder %s116, %s118
    %p122 = scmp.eq.s32.totalorder %s14, 0
    %p123 = por %p121, %p122
    %p124 = scmp.ne.s32.totalorder %s116, %s118
    %p125 = scmp.eq.s32.totalorder %s19, 1
    %p126 = por %p124, %p125
    %p127 = scmp.ne.s32.totalorder %s118, %s119
    %p128 = scmp.eq.s32.totalorder %s19, 0
    %p129 = por %p127, %p128
    %p130 = scmp.ne.s32.totalorder %s118, %s119
    %p131 = scmp.eq.s32.totalorder %s20, 1
    %p132 = por %p130, %p131
    %p134 = scmp.ne.s32.totalorder %s119, %s133
    %p135 = scmp.eq.s32.totalorder %s20, 0
    %p136 = por %p134, %p135
    %s138 = sadd.s32 %s137, 1
    %p141 = scmp.eq.s32.totalorder %s14, 1
    %p142 = scmp.ne.s32.totalorder %s137, %s139
    %p143 = scmp.eq.s32.totalorder %s14, 0
    %p144 = por %p142, %p143
    %p145 = scmp.ne.s32.totalorder %s137, %s139
    %p146 = scmp.eq.s32.totalorder %s19, 1
    %p147 = por %p145, %p146
    %p148 = scmp.ne.s32.totalorder %s139, %s140
    %p149 = scmp.eq.s32.totalorder %s19, 0
    %p150 = por %p148, %p149
    %p151 = scmp.ne.s32.totalorder %s139, %s140
    %p152 = scmp.eq.s32.totalorder %s20, 1
    %p153 = por %p151, %p152
    %p155 = scmp.ne.s32.totalorder %s140, %s154
    %p156 = scmp.eq.s32.totalorder %s20, 0
    %p157 = por %p155, %p156
    %s159 = sadd.s32 %s158, 1
    %p162 = scmp.eq.s32.totalorder %s14, 1
    %p163 = scmp.ne.s32.totalorder %s158, %s160
    %p164 = scmp.eq.s32.totalorder %s14, 0
    %p165 = por %p163, %p164
    %p166 = scmp.ne.s32.totalorder %s158, %s160
    %p167 = scmp.eq.s32.totalorder %s19, 1
    %p168 = por %p166, %p167
    %p169 = scmp.ne.s32.totalorder %s160, %s161
    %p170 = scmp.eq.s32.totalorder %s19, 0
    %p171 = por %p169, %p170
    %p172 = scmp.ne.s32.totalorder %s160, %s161
    %p173 = scmp.eq.s32.totalorder %s20, 1
    %p174 = por %p172, %p173
    %p176 = scmp.ne.s32.totalorder %s161, %s175
    %p177 = scmp.eq.s32.totalorder %s20, 0
    %p178 = por %p176, %p177
    %s180 = sadd.s32 %s179, 1
    %p183 = scmp.eq.s32.totalorder %s14, 1
    %p184 = scmp.ne.s32.totalorder %s179, %s181
    %p185 = scmp.eq.s32.totalorder %s14, 0
    %p186 = por %p184, %p185
    %p187 = scmp.ne.s32.totalorder %s179, %s181
    %p188 = scmp.eq.s32.totalorder %s19, 1
    %p189 = por %p187, %p188
    %p190 = scmp.ne.s32.totalorder %s181, %s182
    %p191 = scmp.eq.s32.totalorder %s19, 0
    %p192 = por %p190, %p191
    %p193 = scmp.ne.s32.totalorder %s181, %s182
    %p194 = scmp.eq.s32.totalorder %s20, 1
    %p195 = por %p193, %p194
    %p197 = scmp.ne.s32.totalorder %s182, %s196
    %p198 = scmp.eq.s32.totalorder %s20, 0
    %p199 = por %p197, %p198
    %s200 = ssub.s32 %s14, %s21
    %p201 = scmp.eq.s32.totalorder %s200, 0
    %s203 = sadd.s32 %s202, 1
    %s204 = scalar_select %p201, %s202, %s203
    %p207 = pneg %p201
    %p208 = scmp.eq.s32.totalorder %s14, 1
    %p209 = por %p207, %p208
    %p210 = scmp.ne.s32.totalorder %s202, %s205
    %p211 = scmp.eq.s32.totalorder %s14, 0
    %p212 = por %p210, %p211
    %p213 = scmp.ne.s32.totalorder %s202, %s205
    %p214 = scmp.eq.s32.totalorder %s19, 1
    %p215 = por %p213, %p214
    %p216 = scmp.ne.s32.totalorder %s205, %s206
    %p217 = scmp.eq.s32.totalorder %s19, 0
    %p218 = por %p216, %p217
    %p219 = scmp.ne.s32.totalorder %s205, %s206
    %p220 = scmp.eq.s32.totalorder %s20, 1
    %p221 = por %p219, %p220
    %p223 = scmp.ne.s32.totalorder %s206, %s222
    %p224 = scmp.eq.s32.totalorder %s20, 0
    %p225 = por %p223, %p224
    %p226 = scmp.le.s32.totalorder 1, %s14
    %p227 = scmp.lt.s32.totalorder %s14, 3
    %p228 = pnand %p226, %p227
    %p229 = pneg %p228
    // Predicated region
    $region9: #{forward.6} parent=5 // pred_check
      _
    $region10: #{forward.6} parent=5 // pred_check_branch
      %231 = sbr.rel (%p228) target = $region12
    $region11: #{forward.6} parent=5 // pred_region
      %s232 = ssub.s32 %s14, 1
      // Predicated region
      $region13: #{forward.6} parent=11 // pred_check
        %p233 = pneg %p61
      $region14: #{forward.6} parent=11 // pred_check_branch
        %235 = sbr.rel (%p233) target = $region16
      $region15: #{forward.6} parent=11 // pred_region
        _
      $region16: #{forward.6} parent=11 // pred_fallthru
        _
      // Predicated region
      $region17: #{forward.6} parent=11 // pred_check
        %p236 = pneg %p82
      $region18: #{forward.6} parent=11 // pred_check_branch
        %238 = sbr.rel (%p236) target = $region20
      $region19: #{forward.6} parent=11 // pred_region
        _
      $region20: #{forward.6} parent=11 // pred_fallthru
        _
      // Predicated region
      $region21: #{forward.6} parent=11 // pred_check
        %p239 = pneg %p129
      $region22: #{forward.6} parent=11 // pred_check_branch
        %241 = sbr.rel (%p239) target = $region24
      $region23: #{forward.6} parent=11 // pred_region
        _
      $region24: #{forward.6} parent=11 // pred_fallthru
        _
      // Predicated region
      $region25: #{forward.6} parent=11 // pred_check
        %p242 = pneg %p150
      $region26: #{forward.6} parent=11 // pred_check_branch
        %244 = sbr.rel (%p242) target = $region28
      $region27: #{forward.6} parent=11 // pred_region
        _
      $region28: #{forward.6} parent=11 // pred_fallthru
        _
      // Predicated region
      $region29: #{forward.6} parent=11 // pred_check
        %p245 = pneg %p171
      $region30: #{forward.6} parent=11 // pred_check_branch
        %247 = sbr.rel (%p245) target = $region32
      $region31: #{forward.6} parent=11 // pred_region
        _
      $region32: #{forward.6} parent=11 // pred_fallthru
        _
      // Predicated region
      $region33: #{forward.6} parent=11 // pred_check
        %p248 = pneg %p192
      $region34: #{forward.6} parent=11 // pred_check_branch
        %250 = sbr.rel (%p248) target = $region36
      $region35: #{forward.6} parent=11 // pred_region
        _
      $region36: #{forward.6} parent=11 // pred_fallthru
        _
    $region12: #{forward.6} parent=5 // pred_fallthru
      _
    %p251 = scmp.lt.s32.totalorder %s14, 2
    // Predicated region
    $region37: #{forward.6} parent=5 // pred_check
      %p252 = pneg %p251
    $region38: #{forward.6} parent=5 // pred_check_branch
      %254 = sbr.rel (%p252) target = $region40
    $region39: #{forward.6} parent=5 // pred_region
      // Predicated region
      $region41: #{forward.6} parent=39 // pred_check
        %p255 = pneg %p34
      $region42: #{forward.6} parent=39 // pred_check_branch
        %257 = sbr.rel (%p255) target = $region44
      $region43: #{forward.6} parent=39 // pred_region
        %p258 = scmp.lt.s32.totalorder %s14, 1
        %s259 = scalar_select %p258, %s14, 1
        %s260 = smul.addr %s259, 8
        %s261 = scalar_lea.vmem %s0, %s260
      $region44: #{forward.6} parent=39 // pred_fallthru
        _
      // Predicated region
      $region45: #{forward.6} parent=39 // pred_check
        %p262 = pneg %p102
      $region46: #{forward.6} parent=39 // pred_check_branch
        %264 = sbr.rel (%p262) target = $region48
      $region47: #{forward.6} parent=39 // pred_region
        %p265 = scmp.lt.s32.totalorder %s14, 1
        %s266 = scalar_select %p265, %s14, 1
        %s267 = scalar_lea.vmem %s3, %s266
      $region48: #{forward.6} parent=39 // pred_fallthru
        _
    $region40: #{forward.6} parent=5 // pred_fallthru
      _
    %p268 = scmp.le.s32.totalorder 1, %s14
    %p269 = scmp.lt.s32.totalorder %s14, 3
    %p270 = pnand %p268, %p269
    %p271 = pneg %p270
    // Predicated region
    $region49: #{forward.6} parent=5 // pred_check
      _
    $region50: #{forward.6} parent=5 // pred_check_branch
      %273 = sbr.rel (%p270) target = $region52
    $region51: #{forward.6} parent=5 // pred_region
      %s274 = ssub.s32 %s14, 1
      %p275 = scmp.lt.s32.totalorder %s19, 1
      %s276 = scalar_select %p275, %s19, 1
      %s277 = smul.addr %s276, 8
      %s278 = scalar_lea.vmem %s0, %s277
      %p279 = pneg %p40
      %p280 = pneg %p37
      %p281 = pneg %p61
      %p282 = pneg %p58
      %p283 = pneg %p82
      %p284 = pneg %p79
      %p285 = scmp.lt.s32.totalorder %s19, 1
      %s286 = scalar_select %p285, %s19, 1
      %s287 = scalar_lea.vmem %s3, %s286
      %p288 = pneg %p108
      %p289 = pneg %p105
      %p290 = pneg %p129
      %p291 = pneg %p126
      %p292 = pneg %p150
      %p293 = pneg %p147
      %p294 = pneg %p171
      %p295 = pneg %p168
      %p296 = pneg %p192
      %p297 = pneg %p189
      %p298 = pneg %p218
      %p299 = pneg %p215
      %p300 = scmp.lt.s32.totalorder %s19, 1
      %s301 = scalar_select %p300, %s19, 1
      %s302 = smul.addr %s301, 8
      %s303 = scalar_lea.vmem %s8, %s302
      %p304 = scmp.lt.s32.totalorder %s19, 1
      %s305 = scalar_select %p304, %s19, 1
      %s306 = smul.addr %s305, 8
      %s307 = scalar_lea.vmem %s0, %s306
      %p308 = scmp.lt.s32.totalorder %s19, 1
      %s309 = scalar_select %p308, %s19, 1
      %s310 = scalar_lea.vmem %s3, %s309
      %p311 = scmp.lt.s32.totalorder %s19, 1
      %s312 = scalar_select %p311, %s19, 1
      %s313 = smul.addr %s312, 8
      %s314 = scalar_lea.vmem %s8, %s313
      %v315 = vld [vmem:[%s307] sm:$0xff]
      %v316 = vld [vmem:[%s1] sm:$0xff]
      %v317 = vld [vmem:[%s1 + $0x8] sm:$0xff]
      %v318 = vld [vmem:[%s1 + $0x10] sm:$0xff]
      %v319 = vld [vmem:[%s1 + $0x18] sm:$0xff]
      %v320 = vld [vmem:[%s2] sm:$0x1]
      %v322 = vlaneseq
      %v323 = vshrl.u32 %v322, 7
      %v324 = vsub.s32 0, %v323
      %v325 = vrot.slane %v320, %v324
      %vm327 = vcmask 261120
      %v329 = vsel %vm327, %v315, 0
      %331 = vmatprep.subr.mxu0 0.0
      %332 = vmatpush1.msra.mxu0 %v316
      %333 = vmatprep.subr.mxu0 0.0
      %334 = vmatpush1.msra.mxu0 %v317
      %335 = vmatprep.subr.mxu0 0.0
      %336 = vmatpush1.msra.mxu0 %v318
      %337 = vmatprep.subr.mxu0 0.0
      %338 = vmatpush1.msra.mxu0 %v319
      %339 = vmatprep.subr.mxu0 0.0
      %340 = vmatpush1.msra.mxu0 0.0
      %341 = vmatprep.subr.mxu0 0.0
      %342 = vmatpush1.msra.mxu0 0.0
      %343 = vmatprep.subr.mxu0 0.0
      %344 = vmatpush1.msra.mxu0 0.0
      %345 = vmatprep.subr.mxu0 0.0
      %346 = vmatpush1.msra.mxu0 0.0
      %347 = vmatprep.subr.mxu0 0.0
      %348 = vmatpush1.msra.mxu0 0.0
      %349 = vmatprep.subr.mxu0 0.0
      %350 = vmatpush1.msra.mxu0 0.0
      %351 = vmatprep.subr.mxu0 0.0
      %352 = vmatpush1.msra.mxu0 0.0
      %353 = vmatprep.subr.mxu0 0.0
      %354 = vmatpush1.msra.mxu0 0.0
      %355 = vmatprep.subr.mxu0 0.0
      %356 = vmatpush1.msra.mxu0 0.0
      %357 = vmatprep.subr.mxu0 0.0
      %358 = vmatpush1.msra.mxu0 0.0
      %359 = vmatprep.subr.mxu0 0.0
      %360 = vmatpush1.msra.mxu0 0.0
      %361 = vmatprep.subr.mxu0 0.0
      %362 = vmatpush1.msra.mxu0 0.0
      %363 = vmatprep.subr.mxu0 0.0
      %364 = vmatpush1.msra.mxu0 0.0
      %365 = vmatprep.subr.mxu0 0.0
      %366 = vmatpush1.msra.mxu0 0.0
      %367 = vmatprep.subr.mxu0 0.0
      %368 = vmatpush1.msra.mxu0 0.0
      %369 = vmatprep.subr.mxu0 0.0
      %370 = vmatpush1.msra.mxu0 0.0
      %371 = vmatprep.subr.mxu0 0.0
      %372 = vmatpush1.msra.mxu0 0.0
      %373 = vmatprep.subr.mxu0 0.0
      %374 = vmatpush1.msra.mxu0 0.0
      %375 = vmatprep.subr.mxu0 0.0
      %376 = vmatpush1.msra.mxu0 0.0
      %377 = vmatprep.subr.mxu0 0.0
      %378 = vmatpush1.msra.mxu0 0.0
      %379 = vmatprep.subr.mxu0 0.0
      %380 = vmatpush1.msra.mxu0 0.0
      %381 = vmatprep.subr.mxu0 0.0
      %382 = vmatpush1.msra.mxu0 0.0
      %383 = vmatprep.subr.mxu0 0.0
      %384 = vmatpush1.msra.mxu0 0.0
      %385 = vmatprep.subr.mxu0 0.0
      %386 = vmatpush1.msra.mxu0 0.0
      %387 = vmatprep.subr.mxu0 0.0
      %388 = vmatpush1.msra.mxu0 0.0
      %389 = vmatprep.subr.mxu0 0.0
      %390 = vmatpush1.msra.mxu0 0.0
      %391 = vmatprep.subr.mxu0 0.0
      %392 = vmatpush1.msra.mxu0 0.0
      %393 = vmatprep.subr.mxu0 0.0
      %394 = vmatpush1.msra.mxu0 0.0
      %395 = vmatprep.mubr.f32.mxu0 0.0
      %396 = vmatmul.mubr.f32.gmra.mrb[0].mxu0 %v329
      %v397 = vpop.f32.mrb[0].mxu0
      %v398 = vadd.f32 %v325, %v397
      %v399 = vpop.f32.mrb[0].mxu0
      %400 = vdwg.mxu0
      %vm401 = vcmask 785408
      %402 = vst.msk [vmem:[#allocation2] sm:$0xff] %vm401, %v398
      %v403 = vld [vmem:[%s310] sm:$0x1]
      %v404 = vld [vmem:[%s5] sm:$0x1]
      %v406 = vlaneseq
      %v407 = vshrl.u32 %v406, 7
      %v408 = vsub.s32 0, %v407
      %v409 = vrot.slane %v404, %v408
      %v411 = vadd.f32 %v409, %v315
      %v412 = vld [vmem:[#allocation2] sm:$0xff]
      %414 = vrot.lane.b32.xlu0 %v412, 96
      %v415 = vpop.permute.xlu0 %414
      %vm416 = vcmask 64512
      %v417 = vsel %vm416, %v412, 0
      %v419 = vsel %vm416, %v415, 0
      %421 = vmatprep.subr.mxu0 0.0
      %422 = vmatpush1.xpose.msra.mxu0 %v419
      %423 = vmatprep.subr.mxu0 0.0
      %424 = vmatpush1.xpose.msra.mxu0 0.0
      %425 = vmatprep.subr.mxu0 0.0
      %426 = vmatpush1.xpose.msra.mxu0 0.0
      %427 = vmatprep.subr.mxu0 0.0
      %428 = vmatpush1.xpose.msra.mxu0 0.0
      %429 = vmatprep.subr.mxu0 0.0
      %430 = vmatpush1.xpose.msra.mxu0 0.0
      %431 = vmatprep.subr.mxu0 0.0
      %432 = vmatpush1.xpose.msra.mxu0 0.0
      %433 = vmatprep.subr.mxu0 0.0
      %434 = vmatpush1.xpose.msra.mxu0 0.0
      %435 = vmatprep.subr.mxu0 0.0
      %436 = vmatpush1.xpose.msra.mxu0 0.0
      %437 = vmatprep.subr.mxu0 0.0
      %438 = vmatpush1.xpose.msra.mxu0 0.0
      %439 = vmatprep.subr.mxu0 0.0
      %440 = vmatpush1.xpose.msra.mxu0 0.0
      %441 = vmatprep.subr.mxu0 0.0
      %442 = vmatpush1.xpose.msra.mxu0 0.0
      %443 = vmatprep.subr.mxu0 0.0
      %444 = vmatpush1.xpose.msra.mxu0 0.0
      %445 = vmatprep.subr.mxu0 0.0
      %446 = vmatpush1.xpose.msra.mxu0 0.0
      %447 = vmatprep.subr.mxu0 0.0
      %448 = vmatpush1.xpose.msra.mxu0 0.0
      %449 = vmatprep.subr.mxu0 0.0
      %450 = vmatpush1.xpose.msra.mxu0 0.0
      %451 = vmatprep.subr.mxu0 0.0
      %452 = vmatpush1.xpose.msra.mxu0 0.0
      %453 = vmatprep.subr.mxu0 0.0
      %454 = vmatpush1.xpose.msra.mxu0 0.0
      %455 = vmatprep.subr.mxu0 0.0
      %456 = vmatpush1.xpose.msra.mxu0 0.0
      %457 = vmatprep.subr.mxu0 0.0
      %458 = vmatpush1.xpose.msra.mxu0 0.0
      %459 = vmatprep.subr.mxu0 0.0
      %460 = vmatpush1.xpose.msra.mxu0 0.0
      %461 = vmatprep.subr.mxu0 0.0
      %462 = vmatpush1.xpose.msra.mxu0 0.0
      %463 = vmatprep.subr.mxu0 0.0
      %464 = vmatpush1.xpose.msra.mxu0 0.0
      %465 = vmatprep.subr.mxu0 0.0
      %466 = vmatpush1.xpose.msra.mxu0 0.0
      %467 = vmatprep.subr.mxu0 0.0
      %468 = vmatpush1.xpose.msra.mxu0 0.0
      %469 = vmatprep.subr.mxu0 0.0
      %470 = vmatpush1.xpose.msra.mxu0 0.0
      %471 = vmatprep.subr.mxu0 0.0
      %472 = vmatpush1.xpose.msra.mxu0 0.0
      %473 = vmatprep.subr.mxu0 0.0
      %474 = vmatpush1.xpose.msra.mxu0 0.0
      %475 = vmatprep.subr.mxu0 0.0
      %476 = vmatpush1.xpose.msra.mxu0 0.0
      %477 = vmatprep.subr.mxu0 0.0
      %478 = vmatpush1.xpose.msra.mxu0 0.0
      %479 = vmatprep.subr.mxu0 0.0
      %480 = vmatpush1.xpose.msra.mxu0 0.0
      %481 = vmatprep.subr.mxu0 0.0
      %482 = vmatpush1.xpose.msra.mxu0 0.0
      %483 = vmatprep.subr.mxu0 0.0
      %484 = vmatpush1.xpose.msra.mxu0 0.0
      %485 = vmatprep.mubr.f32.mxu0 0.0
      %486 = vmatmul.mubr.f32.gmra.mrb[0].mxu0 %v417
      %v487 = vpop.f32.mrb[0].mxu0
      %v488 = vadd.f32 0.0, %v487
      %v489 = vpop.f32.mrb[0].mxu0
      %490 = vdwg.mxu0
      %v491 = vmul.f32 %v488, 0.35355338
      %v493 = vlaneseq
      %v494 = vshrl.u32 %v493, 7
      %v495 = vsub.s32 0, %v494
      %v496 = vrot.slane %v403, %v495
      %v498 = vadd.f32 %v491, %v496
      %v499 = vsel %vm416, %v498, -inf
      %500 = vmax.xlane.f32.xlu0 %v499
      %v501 = vpop.xlane.xlu0 %500
      %v502 = vsub.f32 %v498, %v501
      %v503 = vmul.f32 %v502, 1.442695
      %v504 = vpow.pop %v503
      %v505 = vsel %vm416, %v504, 0.0
      %506 = vadd.xlane.f32.xlu0 %v505
      %v507 = vpop.xlane.xlu0 %506
      %508 = vrot.lane.b32.xlu0 %v412, 64
      %v509 = vpop.permute.xlu0 %508
      %v512 = vsel %vm416, %v504, 0
      %514 = vmatprep.subr.mxu0 0.0
      %515 = vmatpush1.msra.mxu0 %v509
      %516 = vmatprep.subr.mxu0 0.0
      %517 = vmatpush1.msra.mxu0 0.0
      %518 = vmatprep.subr.mxu0 0.0
      %519 = vmatpush1.msra.mxu0 0.0
      %520 = vmatprep.subr.mxu0 0.0
      %521 = vmatpush1.msra.mxu0 0.0
      %522 = vmatprep.subr.mxu0 0.0
      %523 = vmatpush1.msra.mxu0 0.0
      %524 = vmatprep.subr.mxu0 0.0
      %525 = vmatpush1.msra.mxu0 0.0
      %526 = vmatprep.subr.mxu0 0.0
      %527 = vmatpush1.msra.mxu0 0.0
      %528 = vmatprep.subr.mxu0 0.0
      %529 = vmatpush1.msra.mxu0 0.0
      %530 = vmatprep.subr.mxu0 0.0
      %531 = vmatpush1.msra.mxu0 0.0
      %532 = vmatprep.subr.mxu0 0.0
      %533 = vmatpush1.msra.mxu0 0.0
      %534 = vmatprep.subr.mxu0 0.0
      %535 = vmatpush1.msra.mxu0 0.0
      %536 = vmatprep.subr.mxu0 0.0
      %537 = vmatpush1.msra.mxu0 0.0
      %538 = vmatprep.subr.mxu0 0.0
      %539 = vmatpush1.msra.mxu0 0.0
      %540 = vmatprep.subr.mxu0 0.0
      %541 = vmatpush1.msra.mxu0 0.0
      %542 = vmatprep.subr.mxu0 0.0
      %543 = vmatpush1.msra.mxu0 0.0
      %544 = vmatprep.subr.mxu0 0.0
      %545 = vmatpush1.msra.mxu0 0.0
      %546 = vmatprep.subr.mxu0 0.0
      %547 = vmatpush1.msra.mxu0 0.0
      %548 = vmatprep.subr.mxu0 0.0
      %549 = vmatpush1.msra.mxu0 0.0
      %550 = vmatprep.subr.mxu0 0.0
      %551 = vmatpush1.msra.mxu0 0.0
      %552 = vmatprep.subr.mxu0 0.0
      %553 = vmatpush1.msra.mxu0 0.0
      %554 = vmatprep.subr.mxu0 0.0
      %555 = vmatpush1.msra.mxu0 0.0
      %556 = vmatprep.subr.mxu0 0.0
      %557 = vmatpush1.msra.mxu0 0.0
      %558 = vmatprep.subr.mxu0 0.0
      %559 = vmatpush1.msra.mxu0 0.0
      %560 = vmatprep.subr.mxu0 0.0
      %561 = vmatpush1.msra.mxu0 0.0
      %562 = vmatprep.subr.mxu0 0.0
      %563 = vmatpush1.msra.mxu0 0.0
      %564 = vmatprep.subr.mxu0 0.0
      %565 = vmatpush1.msra.mxu0 0.0
      %566 = vmatprep.subr.mxu0 0.0
      %567 = vmatpush1.msra.mxu0 0.0
      %568 = vmatprep.subr.mxu0 0.0
      %569 = vmatpush1.msra.mxu0 0.0
      %570 = vmatprep.subr.mxu0 0.0
      %571 = vmatpush1.msra.mxu0 0.0
      %572 = vmatprep.subr.mxu0 0.0
      %573 = vmatpush1.msra.mxu0 0.0
      %574 = vmatprep.subr.mxu0 0.0
      %575 = vmatpush1.msra.mxu0 0.0
      %576 = vmatprep.subr.mxu0 0.0
      %577 = vmatpush1.msra.mxu0 0.0
      %578 = vmatprep.mubr.f32.mxu0 0.0
      %579 = vmatmul.mubr.f32.gmra.mrb[0].mxu0 %v512
      %v580 = vpop.f32.mrb[0].mxu0
      %v581 = vadd.f32 0.0, %v580
      %v582 = vpop.f32.mrb[0].mxu0
      %583 = vdwg.mxu0
      %v584 = vrcp.pop %v507
      %v585 = vmul.f32 %v581, %v584
      %v586 = vld [vmem:[%s4] sm:$0xff]
      %v588 = vsel %vm416, %v585, 0
      %590 = vmatprep.subr.mxu0 0.0
      %591 = vmatpush1.msra.mxu0 %v586
      %592 = vmatprep.subr.mxu0 0.0
      %593 = vmatpush1.msra.mxu0 0.0
      %594 = vmatprep.subr.mxu0 0.0
      %595 = vmatpush1.msra.mxu0 0.0
      %596 = vmatprep.subr.mxu0 0.0
      %597 = vmatpush1.msra.mxu0 0.0
      %598 = vmatprep.subr.mxu0 0.0
      %599 = vmatpush1.msra.mxu0 0.0
      %600 = vmatprep.subr.mxu0 0.0
      %601 = vmatpush1.msra.mxu0 0.0
      %602 = vmatprep.subr.mxu0 0.0
      %603 = vmatpush1.msra.mxu0 0.0
      %604 = vmatprep.subr.mxu0 0.0
      %605 = vmatpush1.msra.mxu0 0.0
      %606 = vmatprep.subr.mxu0 0.0
      %607 = vmatpush1.msra.mxu0 0.0
      %608 = vmatprep.subr.mxu0 0.0
      %609 = vmatpush1.msra.mxu0 0.0
      %610 = vmatprep.subr.mxu0 0.0
      %611 = vmatpush1.msra.mxu0 0.0
      %612 = vmatprep.subr.mxu0 0.0
      %613 = vmatpush1.msra.mxu0 0.0
      %614 = vmatprep.subr.mxu0 0.0
      %615 = vmatpush1.msra.mxu0 0.0
      %616 = vmatprep.subr.mxu0 0.0
      %617 = vmatpush1.msra.mxu0 0.0
      %618 = vmatprep.subr.mxu0 0.0
      %619 = vmatpush1.msra.mxu0 0.0
      %620 = vmatprep.subr.mxu0 0.0
      %621 = vmatpush1.msra.mxu0 0.0
      %622 = vmatprep.subr.mxu0 0.0
      %623 = vmatpush1.msra.mxu0 0.0
      %624 = vmatprep.subr.mxu0 0.0
      %625 = vmatpush1.msra.mxu0 0.0
      %626 = vmatprep.subr.mxu0 0.0
      %627 = vmatpush1.msra.mxu0 0.0
      %628 = vmatprep.subr.mxu0 0.0
      %629 = vmatpush1.msra.mxu0 0.0
      %630 = vmatprep.subr.mxu0 0.0
      %631 = vmatpush1.msra.mxu0 0.0
      %632 = vmatprep.subr.mxu0 0.0
      %633 = vmatpush1.msra.mxu0 0.0
      %634 = vmatprep.subr.mxu0 0.0
      %635 = vmatpush1.msra.mxu0 0.0
      %636 = vmatprep.subr.mxu0 0.0
      %637 = vmatpush1.msra.mxu0 0.0
      %638 = vmatprep.subr.mxu0 0.0
      %639 = vmatpush1.msra.mxu0 0.0
      %640 = vmatprep.subr.mxu0 0.0
      %641 = vmatpush1.msra.mxu0 0.0
      %642 = vmatprep.subr.mxu0 0.0
      %643 = vmatpush1.msra.mxu0 0.0
      %644 = vmatprep.subr.mxu0 0.0
      %645 = vmatpush1.msra.mxu0 0.0
      %646 = vmatprep.subr.mxu0 0.0
      %647 = vmatpush1.msra.mxu0 0.0
      %648 = vmatprep.subr.mxu0 0.0
      %649 = vmatpush1.msra.mxu0 0.0
      %650 = vmatprep.subr.mxu0 0.0
      %651 = vmatpush1.msra.mxu0 0.0
      %652 = vmatprep.subr.mxu0 0.0
      %653 = vmatpush1.msra.mxu0 0.0
      %654 = vmatprep.mubr.f32.mxu0 0.0
      %655 = vmatmul.mubr.f32.gmra.mrb[0].mxu0 %v588
      %v656 = vpop.f32.mrb[0].mxu0
      %v657 = vadd.f32 0.0, %v656
      %v658 = vpop.f32.mrb[0].mxu0
      %659 = vdwg.mxu0
      %v660 = vadd.f32 %v411, %v657
      %661 = vrot.lane.b32.xlu0 %v412, 120
      %v662 = vpop.permute.xlu0 %661
      %663 = vrot.lane.b32.xlu0 %v412, 88
      %v664 = vpop.permute.xlu0 %663
      %v665 = vsel %vm416, %v662, 0
      %v667 = vsel %vm416, %v664, 0
      %669 = vmatprep.subr.mxu0 0.0
      %670 = vmatpush1.xpose.msra.mxu0 %v667
      %671 = vmatprep.subr.mxu0 0.0
      %672 = vmatpush1.xpose.msra.mxu0 0.0
      %673 = vmatprep.subr.mxu0 0.0
      %674 = vmatpush1.xpose.msra.mxu0 0.0
      %675 = vmatprep.subr.mxu0 0.0
      %676 = vmatpush1.xpose.msra.mxu0 0.0
      %677 = vmatprep.subr.mxu0 0.0
      %678 = vmatpush1.xpose.msra.mxu0 0.0
      %679 = vmatprep.subr.mxu0 0.0
      %680 = vmatpush1.xpose.msra.mxu0 0.0
      %681 = vmatprep.subr.mxu0 0.0
      %682 = vmatpush1.xpose.msra.mxu0 0.0
      %683 = vmatprep.subr.mxu0 0.0
      %684 = vmatpush1.xpose.msra.mxu0 0.0
      %685 = vmatprep.subr.mxu0 0.0
      %686 = vmatpush1.xpose.msra.mxu0 0.0
      %687 = vmatprep.subr.mxu0 0.0
      %688 = vmatpush1.xpose.msra.mxu0 0.0
      %689 = vmatprep.subr.mxu0 0.0
      %690 = vmatpush1.xpose.msra.mxu0 0.0
      %691 = vmatprep.subr.mxu0 0.0
      %692 = vmatpush1.xpose.msra.mxu0 0.0
      %693 = vmatprep.subr.mxu0 0.0
      %694 = vmatpush1.xpose.msra.mxu0 0.0
      %695 = vmatprep.subr.mxu0 0.0
      %696 = vmatpush1.xpose.msra.mxu0 0.0
      %697 = vmatprep.subr.mxu0 0.0
      %698 = vmatpush1.xpose.msra.mxu0 0.0
      %699 = vmatprep.subr.mxu0 0.0
      %700 = vmatpush1.xpose.msra.mxu0 0.0
      %701 = vmatprep.subr.mxu0 0.0
      %702 = vmatpush1.xpose.msra.mxu0 0.0
      %703 = vmatprep.subr.mxu0 0.0
      %704 = vmatpush1.xpose.msra.mxu0 0.0
      %705 = vmatprep.subr.mxu0 0.0
      %706 = vmatpush1.xpose.msra.mxu0 0.0
      %707 = vmatprep.subr.mxu0 0.0
      %708 = vmatpush1.xpose.msra.mxu0 0.0
      %709 = vmatprep.subr.mxu0 0.0
      %710 = vmatpush1.xpose.msra.mxu0 0.0
      %711 = vmatprep.subr.mxu0 0.0
      %712 = vmatpush1.xpose.msra.mxu0 0.0
      %713 = vmatprep.subr.mxu0 0.0
      %714 = vmatpush1.xpose.msra.mxu0 0.0
      %715 = vmatprep.subr.mxu0 0.0
      %716 = vmatpush1.xpose.msra.mxu0 0.0
      %717 = vmatprep.subr.mxu0 0.0
      %718 = vmatpush1.xpose.msra.mxu0 0.0
      %719 = vmatprep.subr.mxu0 0.0
      %720 = vmatpush1.xpose.msra.mxu0 0.0
      %721 = vmatprep.subr.mxu0 0.0
      %722 = vmatpush1.xpose.msra.mxu0 0.0
      %723 = vmatprep.subr.mxu0 0.0
      %724 = vmatpush1.xpose.msra.mxu0 0.0
      %725 = vmatprep.subr.mxu0 0.0
      %726 = vmatpush1.xpose.msra.mxu0 0.0
      %727 = vmatprep.subr.mxu0 0.0
      %728 = vmatpush1.xpose.msra.mxu0 0.0
      %729 = vmatprep.subr.mxu0 0.0
      %730 = vmatpush1.xpose.msra.mxu0 0.0
      %731 = vmatprep.subr.mxu0 0.0
      %732 = vmatpush1.xpose.msra.mxu0 0.0
      %733 = vmatprep.mubr.f32.mxu0 0.0
      %734 = vmatmul.mubr.f32.gmra.mrb[0].mxu0 %v665
      %v735 = vpop.f32.mrb[0].mxu0
      %v736 = vadd.f32 0.0, %v735
      %v737 = vpop.f32.mrb[0].mxu0
      %738 = vdwg.mxu0
      %v739 = vmul.f32 %v736, 0.35355338
      %v740 = vadd.f32 %v739, %v496
      %v741 = vsel %vm416, %v740, -inf
      %742 = vmax.xlane.f32.xlu0 %v741
      %v743 = vpop.xlane.xlu0 %742
      %v744 = vsub.f32 %v740, %v743
      %v745 = vmul.f32 %v744, 1.442695
      %v746 = vpow.pop %v745
      %v747 = vsel %vm416, %v746, 0.0
      %748 = vadd.xlane.f32.xlu0 %v747
      %v749 = vpop.xlane.xlu0 %748
      %750 = vrot.lane.b32.xlu0 %v412, 56
      %v751 = vpop.permute.xlu0 %750
      %v754 = vsel %vm416, %v746, 0
      %756 = vmatprep.subr.mxu0 0.0
      %757 = vmatpush1.msra.mxu0 %v751
      %758 = vmatprep.subr.mxu0 0.0
      %759 = vmatpush1.msra.mxu0 0.0
      %760 = vmatprep.subr.mxu0 0.0
      %761 = vmatpush1.msra.mxu0 0.0
      %762 = vmatprep.subr.mxu0 0.0
      %763 = vmatpush1.msra.mxu0 0.0
      %764 = vmatprep.subr.mxu0 0.0
      %765 = vmatpush1.msra.mxu0 0.0
      %766 = vmatprep.subr.mxu0 0.0
      %767 = vmatpush1.msra.mxu0 0.0
      %768 = vmatprep.subr.mxu0 0.0
      %769 = vmatpush1.msra.mxu0 0.0
      %770 = vmatprep.subr.mxu0 0.0
      %771 = vmatpush1.msra.mxu0 0.0
      %772 = vmatprep.subr.mxu0 0.0
      %773 = vmatpush1.msra.mxu0 0.0
      %774 = vmatprep.subr.mxu0 0.0
      %775 = vmatpush1.msra.mxu0 0.0
      %776 = vmatprep.subr.mxu0 0.0
      %777 = vmatpush1.msra.mxu0 0.0
      %778 = vmatprep.subr.mxu0 0.0
      %779 = vmatpush1.msra.mxu0 0.0
      %780 = vmatprep.subr.mxu0 0.0
      %781 = vmatpush1.msra.mxu0 0.0
      %782 = vmatprep.subr.mxu0 0.0
      %783 = vmatpush1.msra.mxu0 0.0
      %784 = vmatprep.subr.mxu0 0.0
      %785 = vmatpush1.msra.mxu0 0.0
      %786 = vmatprep.subr.mxu0 0.0
      %787 = vmatpush1.msra.mxu0 0.0
      %788 = vmatprep.subr.mxu0 0.0
      %789 = vmatpush1.msra.mxu0 0.0
      %790 = vmatprep.subr.mxu0 0.0
      %791 = vmatpush1.msra.mxu0 0.0
      %792 = vmatprep.subr.mxu0 0.0
      %793 = vmatpush1.msra.mxu0 0.0
      %794 = vmatprep.subr.mxu0 0.0
      %795 = vmatpush1.msra.mxu0 0.0
      %796 = vmatprep.subr.mxu0 0.0
      %797 = vmatpush1.msra.mxu0 0.0
      %798 = vmatprep.subr.mxu0 0.0
      %799 = vmatpush1.msra.mxu0 0.0
      %800 = vmatprep.subr.mxu0 0.0
      %801 = vmatpush1.msra.mxu0 0.0
      %802 = vmatprep.subr.mxu0 0.0
      %803 = vmatpush1.msra.mxu0 0.0
      %804 = vmatprep.subr.mxu0 0.0
      %805 = vmatpush1.msra.mxu0 0.0
      %806 = vmatprep.subr.mxu0 0.0
      %807 = vmatpush1.msra.mxu0 0.0
      %808 = vmatprep.subr.mxu0 0.0
      %809 = vmatpush1.msra.mxu0 0.0
      %810 = vmatprep.subr.mxu0 0.0
      %811 = vmatpush1.msra.mxu0 0.0
      %812 = vmatprep.subr.mxu0 0.0
      %813 = vmatpush1.msra.mxu0 0.0
      %814 = vmatprep.subr.mxu0 0.0
      %815 = vmatpush1.msra.mxu0 0.0
      %816 = vmatprep.subr.mxu0 0.0
      %817 = vmatpush1.msra.mxu0 0.0
      %818 = vmatprep.subr.mxu0 0.0
      %819 = vmatpush1.msra.mxu0 0.0
      %820 = vmatprep.mubr.f32.mxu0 0.0
      %821 = vmatmul.mubr.f32.gmra.mrb[0].mxu0 %v754
      %v822 = vpop.f32.mrb[0].mxu0
      %v823 = vadd.f32 0.0, %v822
      %v824 = vpop.f32.mrb[0].mxu0
      %825 = vdwg.mxu0
      %v826 = vrcp.pop %v749
      %v827 = vmul.f32 %v823, %v826
      %v828 = vld [vmem:[%s4 + $0x8] sm:$0xff]
      %v830 = vsel %vm416, %v827, 0
      %832 = vmatprep.subr.mxu0 0.0
      %833 = vmatpush1.msra.mxu0 %v828
      %834 = vmatprep.subr.mxu0 0.0
      %835 = vmatpush1.msra.mxu0 0.0
      %836 = vmatprep.subr.mxu0 0.0
      %837 = vmatpush1.msra.mxu0 0.0
      %838 = vmatprep.subr.mxu0 0.0
      %839 = vmatpush1.msra.mxu0 0.0
      %840 = vmatprep.subr.mxu0 0.0
      %841 = vmatpush1.msra.mxu0 0.0
      %842 = vmatprep.subr.mxu0 0.0
      %843 = vmatpush1.msra.mxu0 0.0
      %844 = vmatprep.subr.mxu0 0.0
      %845 = vmatpush1.msra.mxu0 0.0
      %846 = vmatprep.subr.mxu0 0.0
      %847 = vmatpush1.msra.mxu0 0.0
      %848 = vmatprep.subr.mxu0 0.0
      %849 = vmatpush1.msra.mxu0 0.0
      %850 = vmatprep.subr.mxu0 0.0
      %851 = vmatpush1.msra.mxu0 0.0
      %852 = vmatprep.subr.mxu0 0.0
      %853 = vmatpush1.msra.mxu0 0.0
      %854 = vmatprep.subr.mxu0 0.0
      %855 = vmatpush1.msra.mxu0 0.0
      %856 = vmatprep.subr.mxu0 0.0
      %857 = vmatpush1.msra.mxu0 0.0
      %858 = vmatprep.subr.mxu0 0.0
      %859 = vmatpush1.msra.mxu0 0.0
      %860 = vmatprep.subr.mxu0 0.0
      %861 = vmatpush1.msra.mxu0 0.0
      %862 = vmatprep.subr.mxu0 0.0
      %863 = vmatpush1.msra.mxu0 0.0
      %864 = vmatprep.subr.mxu0 0.0
      %865 = vmatpush1.msra.mxu0 0.0
      %866 = vmatprep.subr.mxu0 0.0
      %867 = vmatpush1.msra.mxu0 0.0
      %868 = vmatprep.subr.mxu0 0.0
      %869 = vmatpush1.msra.mxu0 0.0
      %870 = vmatprep.subr.mxu0 0.0
      %871 = vmatpush1.msra.mxu0 0.0
      %872 = vmatprep.subr.mxu0 0.0
      %873 = vmatpush1.msra.mxu0 0.0
      %874 = vmatprep.subr.mxu0 0.0
      %875 = vmatpush1.msra.mxu0 0.0
      %876 = vmatprep.subr.mxu0 0.0
      %877 = vmatpush1.msra.mxu0 0.0
      %878 = vmatprep.subr.mxu0 0.0
      %879 = vmatpush1.msra.mxu0 0.0
      %880 = vmatprep.subr.mxu0 0.0
      %881 = vmatpush1.msra.mxu0 0.0
      %882 = vmatprep.subr.mxu0 0.0
      %883 = vmatpush1.msra.mxu0 0.0
      %884 = vmatprep.subr.mxu0 0.0
      %885 = vmatpush1.msra.mxu0 0.0
      %886 = vmatprep.subr.mxu0 0.0
      %887 = vmatpush1.msra.mxu0 0.0
      %888 = vmatprep.subr.mxu0 0.0
      %889 = vmatpush1.msra.mxu0 0.0
      %890 = vmatprep.subr.mxu0 0.0
      %891 = vmatpush1.msra.mxu0 0.0
      %892 = vmatprep.subr.mxu0 0.0
      %893 = vmatpush1.msra.mxu0 0.0
      %894 = vmatprep.subr.mxu0 0.0
      %895 = vmatpush1.msra.mxu0 0.0
      %896 = vmatprep.mubr.f32.mxu0 0.0
      %897 = vmatmul.mubr.f32.gmra.mrb[0].mxu0 %v830
      %v898 = vpop.f32.mrb[0].mxu0
      %v899 = vadd.f32 0.0, %v898
      %v900 = vpop.f32.mrb[0].mxu0
      %901 = vdwg.mxu0
      %v902 = vadd.f32 %v660, %v899
      %903 = vrot.lane.b32.xlu0 %v412, 112
      %v904 = vpop.permute.xlu0 %903
      %905 = vrot.lane.b32.xlu0 %v412, 80
      %v906 = vpop.permute.xlu0 %905
      %v907 = vsel %vm416, %v904, 0
      %v909 = vsel %vm416, %v906, 0
      %911 = vmatprep.subr.mxu0 0.0
      %912 = vmatpush1.xpose.msra.mxu0 %v909
      %913 = vmatprep.subr.mxu0 0.0
      %914 = vmatpush1.xpose.msra.mxu0 0.0
      %915 = vmatprep.subr.mxu0 0.0
      %916 = vmatpush1.xpose.msra.mxu0 0.0
      %917 = vmatprep.subr.mxu0 0.0
      %918 = vmatpush1.xpose.msra.mxu0 0.0
      %919 = vmatprep.subr.mxu0 0.0
      %920 = vmatpush1.xpose.msra.mxu0 0.0
      %921 = vmatprep.subr.mxu0 0.0
      %922 = vmatpush1.xpose.msra.mxu0 0.0
      %923 = vmatprep.subr.mxu0 0.0
      %924 = vmatpush1.xpose.msra.mxu0 0.0
      %925 = vmatprep.subr.mxu0 0.0
      %926 = vmatpush1.xpose.msra.mxu0 0.0
      %927 = vmatprep.subr.mxu0 0.0
      %928 = vmatpush1.xpose.msra.mxu0 0.0
      %929 = vmatprep.subr.mxu0 0.0
      %930 = vmatpush1.xpose.msra.mxu0 0.0
      %931 = vmatprep.subr.mxu0 0.0
      %932 = vmatpush1.xpose.msra.mxu0 0.0
      %933 = vmatprep.subr.mxu0 0.0
      %934 = vmatpush1.xpose.msra.mxu0 0.0
      %935 = vmatprep.subr.mxu0 0.0
      %936 = vmatpush1.xpose.msra.mxu0 0.0
      %937 = vmatprep.subr.mxu0 0.0
      %938 = vmatpush1.xpose.msra.mxu0 0.0
      %939 = vmatprep.subr.mxu0 0.0
      %940 = vmatpush1.xpose.msra.mxu0 0.0
      %941 = vmatprep.subr.mxu0 0.0
      %942 = vmatpush1.xpose.msra.mxu0 0.0
      %943 = vmatprep.subr.mxu0 0.0
      %944 = vmatpush1.xpose.msra.mxu0 0.0
      %945 = vmatprep.subr.mxu0 0.0
      %946 = vmatpush1.xpose.msra.mxu0 0.0
      %947 = vmatprep.subr.mxu0 0.0
      %948 = vmatpush1.xpose.msra.mxu0 0.0
      %949 = vmatprep.subr.mxu0 0.0
      %950 = vmatpush1.xpose.msra.mxu0 0.0
      %951 = vmatprep.subr.mxu0 0.0
      %952 = vmatpush1.xpose.msra.mxu0 0.0
      %953 = vmatprep.subr.mxu0 0.0
      %954 = vmatpush1.xpose.msra.mxu0 0.0
      %955 = vmatprep.subr.mxu0 0.0
      %956 = vmatpush1.xpose.msra.mxu0 0.0
      %957 = vmatprep.subr.mxu0 0.0
      %958 = vmatpush1.xpose.msra.mxu0 0.0
      %959 = vmatprep.subr.mxu0 0.0
      %960 = vmatpush1.xpose.msra.mxu0 0.0
      %961 = vmatprep.subr.mxu0 0.0
      %962 = vmatpush1.xpose.msra.mxu0 0.0
      %963 = vmatprep.subr.mxu0 0.0
      %964 = vmatpush1.xpose.msra.mxu0 0.0
      %965 = vmatprep.subr.mxu0 0.0
      %966 = vmatpush1.xpose.msra.mxu0 0.0
      %967 = vmatprep.subr.mxu0 0.0
      %968 = vmatpush1.xpose.msra.mxu0 0.0
      %969 = vmatprep.subr.mxu0 0.0
      %970 = vmatpush1.xpose.msra.mxu0 0.0
      %971 = vmatprep.subr.mxu0 0.0
      %972 = vmatpush1.xpose.msra.mxu0 0.0
      %973 = vmatprep.subr.mxu0 0.0
      %974 = vmatpush1.xpose.msra.mxu0 0.0
      %975 = vmatprep.mubr.f32.mxu0 0.0
      %976 = vmatmul.mubr.f32.gmra.mrb[0].mxu0 %v907
      %v977 = vpop.f32.mrb[0].mxu0
      %v978 = vadd.f32 0.0, %v977
      %v979 = vpop.f32.mrb[0].mxu0
      %980 = vdwg.mxu0
      %v981 = vmul.f32 %v978, 0.35355338
      %v982 = vadd.f32 %v981, %v496
      %v983 = vsel %vm416, %v982, -inf
      %984 = vmax.xlane.f32.xlu0 %v983
      %v985 = vpop.xlane.xlu0 %984
      %v986 = vsub.f32 %v982, %v985
      %v987 = vmul.f32 %v986, 1.442695
      %v988 = vpow.pop %v987
      %v989 = vsel %vm416, %v988, 0.0
      %990 = vadd.xlane.f32.xlu0 %v989
      %v991 = vpop.xlane.xlu0 %990
      %992 = vrot.lane.b32.xlu0 %v412, 48
      %v993 = vpop.permute.xlu0 %992
      %v996 = vsel %vm416, %v988, 0
      %998 = vmatprep.subr.mxu0 0.0
      %999 = vmatpush1.msra.mxu0 %v993
      %1000 = vmatprep.subr.mxu0 0.0
      %1001 = vmatpush1.msra.mxu0 0.0
      %1002 = vmatprep.subr.mxu0 0.0
      %1003 = vmatpush1.msra.mxu0 0.0
      %1004 = vmatprep.subr.mxu0 0.0
      %1005 = vmatpush1.msra.mxu0 0.0
      %1006 = vmatprep.subr.mxu0 0.0
      %1007 = vmatpush1.msra.mxu0 0.0
      %1008 = vmatprep.subr.mxu0 0.0
      %1009 = vmatpush1.msra.mxu0 0.0
      %1010 = vmatprep.subr.mxu0 0.0
      %1011 = vmatpush1.msra.mxu0 0.0
      %1012 = vmatprep.subr.mxu0 0.0
      %1013 = vmatpush1.msra.mxu0 0.0
      %1014 = vmatprep.subr.mxu0 0.0
      %1015 = vmatpush1.msra.mxu0 0.0
      %1016 = vmatprep.subr.mxu0 0.0
      %1017 = vmatpush1.msra.mxu0 0.0
      %1018 = vmatprep.subr.mxu0 0.0
      %1019 = vmatpush1.msra.mxu0 0.0
      %1020 = vmatprep.subr.mxu0 0.0
      %1021 = vmatpush1.msra.mxu0 0.0
      %1022 = vmatprep.subr.mxu0 0.0
      %1023 = vmatpush1.msra.mxu0 0.0
      %1024 = vmatprep.subr.mxu0 0.0
      %1025 = vmatpush1.msra.mxu0 0.0
      %1026 = vmatprep.subr.mxu0 0.0
      %1027 = vmatpush1.msra.mxu0 0.0
      %1028 = vmatprep.subr.mxu0 0.0
      %1029 = vmatpush1.msra.mxu0 0.0
      %1030 = vmatprep.subr.mxu0 0.0
      %1031 = vmatpush1.msra.mxu0 0.0
      %1032 = vmatprep.subr.mxu0 0.0
      %1033 = vmatpush1.msra.mxu0 0.0
      %1034 = vmatprep.subr.mxu0 0.0
      %1035 = vmatpush1.msra.mxu0 0.0
      %1036 = vmatprep.subr.mxu0 0.0
      %1037 = vmatpush1.msra.mxu0 0.0
      %1038 = vmatprep.subr.mxu0 0.0
      %1039 = vmatpush1.msra.mxu0 0.0
      %1040 = vmatprep.subr.mxu0 0.0
      %1041 = vmatpush1.msra.mxu0 0.0
      %1042 = vmatprep.subr.mxu0 0.0
      %1043 = vmatpush1.msra.mxu0 0.0
      %1044 = vmatprep.subr.mxu0 0.0
      %1045 = vmatpush1.msra.mxu0 0.0
      %1046 = vmatprep.subr.mxu0 0.0
      %1047 = vmatpush1.msra.mxu0 0.0
      %1048 = vmatprep.subr.mxu0 0.0
      %1049 = vmatpush1.msra.mxu0 0.0
      %1050 = vmatprep.subr.mxu0 0.0
      %1051 = vmatpush1.msra.mxu0 0.0
      %1052 = vmatprep.subr.mxu0 0.0
      %1053 = vmatpush1.msra.mxu0 0.0
      %1054 = vmatprep.subr.mxu0 0.0
      %1055 = vmatpush1.msra.mxu0 0.0
      %1056 = vmatprep.subr.mxu0 0.0
      %1057 = vmatpush1.msra.mxu0 0.0
      %1058 = vmatprep.subr.mxu0 0.0
      %1059 = vmatpush1.msra.mxu0 0.0
      %1060 = vmatprep.subr.mxu0 0.0
      %1061 = vmatpush1.msra.mxu0 0.0
      %1062 = vmatprep.mubr.f32.mxu0 0.0
      %1063 = vmatmul.mubr.f32.gmra.mrb[0].mxu0 %v996
      %v1064 = vpop.f32.mrb[0].mxu0
      %v1065 = vadd.f32 0.0, %v1064
      %v1066 = vpop.f32.mrb[0].mxu0
      %1067 = vdwg.mxu0
      %v1068 = vrcp.pop %v991
      %v1069 = vmul.f32 %v1065, %v1068
      %v1070 = vld [vmem:[%s4 + $0x10] sm:$0xff]
      %v1072 = vsel %vm416, %v1069, 0
      %1074 = vmatprep.subr.mxu0 0.0
      %1075 = vmatpush1.msra.mxu0 %v1070
      %1076 = vmatprep.subr.mxu0 0.0
      %1077 = vmatpush1.msra.mxu0 0.0
      %1078 = vmatprep.subr.mxu0 0.0
      %1079 = vmatpush1.msra.mxu0 0.0
      %1080 = vmatprep.subr.mxu0 0.0
      %1081 = vmatpush1.msra.mxu0 0.0
      %1082 = vmatprep.subr.mxu0 0.0
      %1083 = vmatpush1.msra.mxu0 0.0
      %1084 = vmatprep.subr.mxu0 0.0
      %1085 = vmatpush1.msra.mxu0 0.0
      %1086 = vmatprep.subr.mxu0 0.0
      %1087 = vmatpush1.msra.mxu0 0.0
      %1088 = vmatprep.subr.mxu0 0.0
      %1089 = vmatpush1.msra.mxu0 0.0
      %1090 = vmatprep.subr.mxu0 0.0
      %1091 = vmatpush1.msra.mxu0 0.0
      %1092 = vmatprep.subr.mxu0 0.0
      %1093 = vmatpush1.msra.mxu0 0.0
      %1094 = vmatprep.subr.mxu0 0.0
      %1095 = vmatpush1.msra.mxu0 0.0
      %1096 = vmatprep.subr.mxu0 0.0
      %1097 = vmatpush1.msra.mxu0 0.0
      %1098 = vmatprep.subr.mxu0 0.0
      %1099 = vmatpush1.msra.mxu0 0.0
      %1100 = vmatprep.subr.mxu0 0.0
      %1101 = vmatpush1.msra.mxu0 0.0
      %1102 = vmatprep.subr.mxu0 0.0
      %1103 = vmatpush1.msra.mxu0 0.0
      %1104 = vmatprep.subr.mxu0 0.0
      %1105 = vmatpush1.msra.mxu0 0.0
      %1106 = vmatprep.subr.mxu0 0.0
      %1107 = vmatpush1.msra.mxu0 0.0
      %1108 = vmatprep.subr.mxu0 0.0
      %1109 = vmatpush1.msra.mxu0 0.0
      %1110 = vmatprep.subr.mxu0 0.0
      %1111 = vmatpush1.msra.mxu0 0.0
      %1112 = vmatprep.subr.mxu0 0.0
      %1113 = vmatpush1.msra.mxu0 0.0
      %1114 = vmatprep.subr.mxu0 0.0
      %1115 = vmatpush1.msra.mxu0 0.0
      %1116 = vmatprep.subr.mxu0 0.0
      %1117 = vmatpush1.msra.mxu0 0.0
      %1118 = vmatprep.subr.mxu0 0.0
      %1119 = vmatpush1.msra.mxu0 0.0
      %1120 = vmatprep.subr.mxu0 0.0
      %1121 = vmatpush1.msra.mxu0 0.0
      %1122 = vmatprep.subr.mxu0 0.0
      %1123 = vmatpush1.msra.mxu0 0.0
      %1124 = vmatprep.subr.mxu0 0.0
      %1125 = vmatpush1.msra.mxu0 0.0
      %1126 = vmatprep.subr.mxu0 0.0
      %1127 = vmatpush1.msra.mxu0 0.0
      %1128 = vmatprep.subr.mxu0 0.0
      %1129 = vmatpush1.msra.mxu0 0.0
      %1130 = vmatprep.subr.mxu0 0.0
      %1131 = vmatpush1.msra.mxu0 0.0
      %1132 = vmatprep.subr.mxu0 0.0
      %1133 = vmatpush1.msra.mxu0 0.0
      %1134 = vmatprep.subr.mxu0 0.0
      %1135 = vmatpush1.msra.mxu0 0.0
      %1136 = vmatprep.subr.mxu0 0.0
      %1137 = vmatpush1.msra.mxu0 0.0
      %1138 = vmatprep.mubr.f32.mxu0 0.0
      %1139 = vmatmul.mubr.f32.gmra.mrb[0].mxu0 %v1072
      %v1140 = vpop.f32.mrb[0].mxu0
      %v1141 = vadd.f32 0.0, %v1140
      %v1142 = vpop.f32.mrb[0].mxu0
      %1143 = vdwg.mxu0
      %v1144 = vadd.f32 %v902, %v1141
      %1145 = vrot.lane.b32.xlu0 %v412, 104
      %v1146 = vpop.permute.xlu0 %1145
      %1147 = vrot.lane.b32.xlu0 %v412, 72
      %v1148 = vpop.permute.xlu0 %1147
      %v1149 = vsel %vm416, %v1146, 0
      %v1151 = vsel %vm416, %v1148, 0
      %1153 = vmatprep.subr.mxu0 0.0
      %1154 = vmatpush1.xpose.msra.mxu0 %v1151
      %1155 = vmatprep.subr.mxu0 0.0
      %1156 = vmatpush1.xpose.msra.mxu0 0.0
      %1157 = vmatprep.subr.mxu0 0.0
      %1158 = vmatpush1.xpose.msra.mxu0 0.0
      %1159 = vmatprep.subr.mxu0 0.0
      %1160 = vmatpush1.xpose.msra.mxu0 0.0
      %1161 = vmatprep.subr.mxu0 0.0
      %1162 = vmatpush1.xpose.msra.mxu0 0.0
      %1163 = vmatprep.subr.mxu0 0.0
      %1164 = vmatpush1.xpose.msra.mxu0 0.0
      %1165 = vmatprep.subr.mxu0 0.0
      %1166 = vmatpush1.xpose.msra.mxu0 0.0
      %1167 = vmatprep.subr.mxu0 0.0
      %1168 = vmatpush1.xpose.msra.mxu0 0.0
      %1169 = vmatprep.subr.mxu0 0.0
      %1170 = vmatpush1.xpose.msra.mxu0 0.0
      %1171 = vmatprep.subr.mxu0 0.0
      %1172 = vmatpush1.xpose.msra.mxu0 0.0
      %1173 = vmatprep.subr.mxu0 0.0
      %1174 = vmatpush1.xpose.msra.mxu0 0.0
      %1175 = vmatprep.subr.mxu0 0.0
      %1176 = vmatpush1.xpose.msra.mxu0 0.0
      %1177 = vmatprep.subr.mxu0 0.0
      %1178 = vmatpush1.xpose.msra.mxu0 0.0
      %1179 = vmatprep.subr.mxu0 0.0
      %1180 = vmatpush1.xpose.msra.mxu0 0.0
      %1181 = vmatprep.subr.mxu0 0.0
      %1182 = vmatpush1.xpose.msra.mxu0 0.0
      %1183 = vmatprep.subr.mxu0 0.0
      %1184 = vmatpush1.xpose.msra.mxu0 0.0
      %1185 = vmatprep.subr.mxu0 0.0
      %1186 = vmatpush1.xpose.msra.mxu0 0.0
      %1187 = vmatprep.subr.mxu0 0.0
      %1188 = vmatpush1.xpose.msra.mxu0 0.0
      %1189 = vmatprep.subr.mxu0 0.0
      %1190 = vmatpush1.xpose.msra.mxu0 0.0
      %1191 = vmatprep.subr.mxu0 0.0
      %1192 = vmatpush1.xpose.msra.mxu0 0.0
      %1193 = vmatprep.subr.mxu0 0.0
      %1194 = vmatpush1.xpose.msra.mxu0 0.0
      %1195 = vmatprep.subr.mxu0 0.0
      %1196 = vmatpush1.xpose.msra.mxu0 0.0
      %1197 = vmatprep.subr.mxu0 0.0
      %1198 = vmatpush1.xpose.msra.mxu0 0.0
      %1199 = vmatprep.subr.mxu0 0.0
      %1200 = vmatpush1.xpose.msra.mxu0 0.0
      %1201 = vmatprep.subr.mxu0 0.0
      %1202 = vmatpush1.xpose.msra.mxu0 0.0
      %1203 = vmatprep.subr.mxu0 0.0
      %1204 = vmatpush1.xpose.msra.mxu0 0.0
      %1205 = vmatprep.subr.mxu0 0.0
      %1206 = vmatpush1.xpose.msra.mxu0 0.0
      %1207 = vmatprep.subr.mxu0 0.0
      %1208 = vmatpush1.xpose.msra.mxu0 0.0
      %1209 = vmatprep.subr.mxu0 0.0
      %1210 = vmatpush1.xpose.msra.mxu0 0.0
      %1211 = vmatprep.subr.mxu0 0.0
      %1212 = vmatpush1.xpose.msra.mxu0 0.0
      %1213 = vmatprep.subr.mxu0 0.0
      %1214 = vmatpush1.xpose.msra.mxu0 0.0
      %1215 = vmatprep.subr.mxu0 0.0
      %1216 = vmatpush1.xpose.msra.mxu0 0.0
      %1217 = vmatprep.mubr.f32.mxu0 0.0
      %1218 = vmatmul.mubr.f32.gmra.mrb[0].mxu0 %v1149
      %v1219 = vpop.f32.mrb[0].mxu0
      %v1220 = vadd.f32 0.0, %v1219
      %v1221 = vpop.f32.mrb[0].mxu0
      %1222 = vdwg.mxu0
      %v1223 = vmul.f32 %v1220, 0.35355338
      %v1224 = vadd.f32 %v1223, %v496
      %v1225 = vsel %vm416, %v1224, -inf
      %1226 = vmax.xlane.f32.xlu0 %v1225
      %v1227 = vpop.xlane.xlu0 %1226
      %v1228 = vsub.f32 %v1224, %v1227
      %v1229 = vmul.f32 %v1228, 1.442695
      %v1230 = vpow.pop %v1229
      %v1231 = vsel %vm416, %v1230, 0.0
      %1232 = vadd.xlane.f32.xlu0 %v1231
      %v1233 = vpop.xlane.xlu0 %1232
      %1234 = vrot.lane.b32.xlu0 %v412, 40
      %v1235 = vpop.permute.xlu0 %1234
      %v1238 = vsel %vm416, %v1230, 0
      %1240 = vmatprep.subr.mxu0 0.0
      %1241 = vmatpush1.msra.mxu0 %v1235
      %1242 = vmatprep.subr.mxu0 0.0
      %1243 = vmatpush1.msra.mxu0 0.0
      %1244 = vmatprep.subr.mxu0 0.0
      %1245 = vmatpush1.msra.mxu0 0.0
      %1246 = vmatprep.subr.mxu0 0.0
      %1247 = vmatpush1.msra.mxu0 0.0
      %1248 = vmatprep.subr.mxu0 0.0
      %1249 = vmatpush1.msra.mxu0 0.0
      %1250 = vmatprep.subr.mxu0 0.0
      %1251 = vmatpush1.msra.mxu0 0.0
      %1252 = vmatprep.subr.mxu0 0.0
      %1253 = vmatpush1.msra.mxu0 0.0
      %1254 = vmatprep.subr.mxu0 0.0
      %1255 = vmatpush1.msra.mxu0 0.0
      %1256 = vmatprep.subr.mxu0 0.0
      %1257 = vmatpush1.msra.mxu0 0.0
      %1258 = vmatprep.subr.mxu0 0.0
      %1259 = vmatpush1.msra.mxu0 0.0
      %1260 = vmatprep.subr.mxu0 0.0
      %1261 = vmatpush1.msra.mxu0 0.0
      %1262 = vmatprep.subr.mxu0 0.0
      %1263 = vmatpush1.msra.mxu0 0.0
      %1264 = vmatprep.subr.mxu0 0.0
      %1265 = vmatpush1.msra.mxu0 0.0
      %1266 = vmatprep.subr.mxu0 0.0
      %1267 = vmatpush1.msra.mxu0 0.0
      %1268 = vmatprep.subr.mxu0 0.0
      %1269 = vmatpush1.msra.mxu0 0.0
      %1270 = vmatprep.subr.mxu0 0.0
      %1271 = vmatpush1.msra.mxu0 0.0
      %1272 = vmatprep.subr.mxu0 0.0
      %1273 = vmatpush1.msra.mxu0 0.0
      %1274 = vmatprep.subr.mxu0 0.0
      %1275 = vmatpush1.msra.mxu0 0.0
      %1276 = vmatprep.subr.mxu0 0.0
      %1277 = vmatpush1.msra.mxu0 0.0
      %1278 = vmatprep.subr.mxu0 0.0
      %1279 = vmatpush1.msra.mxu0 0.0
      %1280 = vmatprep.subr.mxu0 0.0
      %1281 = vmatpush1.msra.mxu0 0.0
      %1282 = vmatprep.subr.mxu0 0.0
      %1283 = vmatpush1.msra.mxu0 0.0
      %1284 = vmatprep.subr.mxu0 0.0
      %1285 = vmatpush1.msra.mxu0 0.0
      %1286 = vmatprep.subr.mxu0 0.0
      %1287 = vmatpush1.msra.mxu0 0.0
      %1288 = vmatprep.subr.mxu0 0.0
      %1289 = vmatpush1.msra.mxu0 0.0
      %1290 = vmatprep.subr.mxu0 0.0
      %1291 = vmatpush1.msra.mxu0 0.0
      %1292 = vmatprep.subr.mxu0 0.0
      %1293 = vmatpush1.msra.mxu0 0.0
      %1294 = vmatprep.subr.mxu0 0.0
      %1295 = vmatpush1.msra.mxu0 0.0
      %1296 = vmatprep.subr.mxu0 0.0
      %1297 = vmatpush1.msra.mxu0 0.0
      %1298 = vmatprep.subr.mxu0 0.0
      %1299 = vmatpush1.msra.mxu0 0.0
      %1300 = vmatprep.subr.mxu0 0.0
      %1301 = vmatpush1.msra.mxu0 0.0
      %1302 = vmatprep.subr.mxu0 0.0
      %1303 = vmatpush1.msra.mxu0 0.0
      %1304 = vmatprep.mubr.f32.mxu0 0.0
      %1305 = vmatmul.mubr.f32.gmra.mrb[0].mxu0 %v1238
      %v1306 = vpop.f32.mrb[0].mxu0
      %v1307 = vadd.f32 0.0, %v1306
      %v1308 = vpop.f32.mrb[0].mxu0
      %1309 = vdwg.mxu0
      %v1310 = vrcp.pop %v1233
      %v1311 = vmul.f32 %v1307, %v1310
      %v1312 = vld [vmem:[%s4 + $0x18] sm:$0xff]
      %v1314 = vsel %vm416, %v1311, 0
      %1316 = vmatprep.subr.mxu0 0.0
      %1317 = vmatpush1.msra.mxu0 %v1312
      %1318 = vmatprep.subr.mxu0 0.0
      %1319 = vmatpush1.msra.mxu0 0.0
      %1320 = vmatprep.subr.mxu0 0.0
      %1321 = vmatpush1.msra.mxu0 0.0
      %1322 = vmatprep.subr.mxu0 0.0
      %1323 = vmatpush1.msra.mxu0 0.0
      %1324 = vmatprep.subr.mxu0 0.0
      %1325 = vmatpush1.msra.mxu0 0.0
      %1326 = vmatprep.subr.mxu0 0.0
      %1327 = vmatpush1.msra.mxu0 0.0
      %1328 = vmatprep.subr.mxu0 0.0
      %1329 = vmatpush1.msra.mxu0 0.0
      %1330 = vmatprep.subr.mxu0 0.0
      %1331 = vmatpush1.msra.mxu0 0.0
      %1332 = vmatprep.subr.mxu0 0.0
      %1333 = vmatpush1.msra.mxu0 0.0
      %1334 = vmatprep.subr.mxu0 0.0
      %1335 = vmatpush1.msra.mxu0 0.0
      %1336 = vmatprep.subr.mxu0 0.0
      %1337 = vmatpush1.msra.mxu0 0.0
      %1338 = vmatprep.subr.mxu0 0.0
      %1339 = vmatpush1.msra.mxu0 0.0
      %1340 = vmatprep.subr.mxu0 0.0
      %1341 = vmatpush1.msra.mxu0 0.0
      %1342 = vmatprep.subr.mxu0 0.0
      %1343 = vmatpush1.msra.mxu0 0.0
      %1344 = vmatprep.subr.mxu0 0.0
      %1345 = vmatpush1.msra.mxu0 0.0
      %1346 = vmatprep.subr.mxu0 0.0
      %1347 = vmatpush1.msra.mxu0 0.0
      %1348 = vmatprep.subr.mxu0 0.0
      %1349 = vmatpush1.msra.mxu0 0.0
      %1350 = vmatprep.subr.mxu0 0.0
      %1351 = vmatpush1.msra.mxu0 0.0
      %1352 = vmatprep.subr.mxu0 0.0
      %1353 = vmatpush1.msra.mxu0 0.0
      %1354 = vmatprep.subr.mxu0 0.0
      %1355 = vmatpush1.msra.mxu0 0.0
      %1356 = vmatprep.subr.mxu0 0.0
      %1357 = vmatpush1.msra.mxu0 0.0
      %1358 = vmatprep.subr.mxu0 0.0
      %1359 = vmatpush1.msra.mxu0 0.0
      %1360 = vmatprep.subr.mxu0 0.0
      %1361 = vmatpush1.msra.mxu0 0.0
      %1362 = vmatprep.subr.mxu0 0.0
      %1363 = vmatpush1.msra.mxu0 0.0
      %1364 = vmatprep.subr.mxu0 0.0
      %1365 = vmatpush1.msra.mxu0 0.0
      %1366 = vmatprep.subr.mxu0 0.0
      %1367 = vmatpush1.msra.mxu0 0.0
      %1368 = vmatprep.subr.mxu0 0.0
      %1369 = vmatpush1.msra.mxu0 0.0
      %1370 = vmatprep.subr.mxu0 0.0
      %1371 = vmatpush1.msra.mxu0 0.0
      %1372 = vmatprep.subr.mxu0 0.0
      %1373 = vmatpush1.msra.mxu0 0.0
      %1374 = vmatprep.subr.mxu0 0.0
      %1375 = vmatpush1.msra.mxu0 0.0
      %1376 = vmatprep.subr.mxu0 0.0
      %1377 = vmatpush1.msra.mxu0 0.0
      %1378 = vmatprep.subr.mxu0 0.0
      %1379 = vmatpush1.msra.mxu0 0.0
      %1380 = vmatprep.mubr.f32.mxu0 0.0
      %1381 = vmatmul.mubr.f32.gmra.mrb[0].mxu0 %v1314
      %v1382 = vpop.f32.mrb[0].mxu0
      %v1383 = vadd.f32 0.0, %v1382
      %v1384 = vpop.f32.mrb[0].mxu0
      %1385 = vdwg.mxu0
      %v1386 = vadd.f32 %v1144, %v1383
      %v1387 = vsel %vm327, %v1386, 0.0
      %1388 = vadd.xlane.f32.xlu0 %v1387
      %v1389 = vpop.xlane.xlu0 %1388
      %v1390 = vrcp.pop 32.0
      %v1391 = vmul.f32 %v1389, %v1390
      %v1392 = vsub.f32 %v1386, %v1391
      %v1393 = vmul.f32 %v1392, %v1392
      %v1394 = vsel %vm327, %v1393, 0.0
      %1395 = vadd.xlane.f32.xlu0 %v1394
      %v1396 = vpop.xlane.xlu0 %1395
      %v1397 = vmul.f32 %v1396, %v1390
      %v1398 = vadd.f32 %v1397, 1e-12
      %v1399 = vrsqrt.pop %v1398
      %v1400 = vmul.f32 %v1392, %v1399
      %v1401 = vld [vmem:[%s6] sm:$0x1]
      %v1403 = vlaneseq
      %v1404 = vshrl.u32 %v1403, 7
      %v1405 = vsub.s32 0, %v1404
      %v1406 = vrot.slane %v1401, %v1405
      %v1408 = vmul.f32 %v1400, %v1406
      %v1409 = vld [vmem:[%s7] sm:$0x1]
      %v1411 = vlaneseq
      %v1412 = vshrl.u32 %v1411, 7
      %v1413 = vsub.s32 0, %v1412
      %v1414 = vrot.slane %v1409, %v1413
      %v1416 = vadd.f32 %v1408, %v1414
      %1417 = vst.msk [vmem:[%s314] sm:$0xff] %vm327, %v1416
      %p1418 = scmp.lt.s32.totalorder %s19, 1
      %s1419 = scalar_select %p1418, %s19, 1
      %s1420 = smul.addr %s1419, 8
      %s1421 = scalar_lea.vmem %s8, %s1420
      // Predicated region
      $region53: #{forward.6} parent=51 // pred_check
        %p1422 = pneg %p215
      $region54: #{forward.6} parent=51 // pred_check_branch
        %1424 = sbr.rel (%p1422) target = $region56
      $region55: #{forward.6} parent=51 // pred_region
        _
      $region56: #{forward.6} parent=51 // pred_fallthru
        _
    $region52: #{forward.6} parent=5 // pred_fallthru
      _
    %p1425 = scmp.le.s32.totalorder 2, %s14
    // Predicated region
    $region57: #{forward.6} parent=5 // pred_check
      %p1426 = pneg %p1425
    $region58: #{forward.6} parent=5 // pred_check_branch
      %1428 = sbr.rel (%p1426) target = $region60
    $region59: #{forward.6} parent=5 // pred_region
      %s1429 = ssub.s32 %s14, 2
      // Predicated region
      $region61: #{forward.6} parent=59 // pred_check
        %p1430 = pneg %p221
      $region62: #{forward.6} parent=59 // pred_check_branch
        %1432 = sbr.rel (%p1430) target = $region64
      $region63: #{forward.6} parent=59 // pred_region
        %p1433 = scmp.lt.s32.totalorder %s20, 1
        %s1434 = scalar_select %p1433, %s20, 1
        %s1435 = smul.addr %s1434, 8
        %s1436 = scalar_lea.vmem %s8, %s1435
      $region64: #{forward.6} parent=59 // pred_fallthru
        _
    $region60: #{forward.6} parent=5 // pred_fallthru
      _
  $region6: #{forward.6} parent=0 // loop_footer
    %s18 = sadd.s32 1, %s14
  $region7: #{forward.6} parent=0 // loop_footer_branch
    %13 = sbr.rel target = $region3
  $region8: #{forward.6} parent=0 // loop_exit
    _

</llo_original>
